<compile_context>
chip_gen: v6e
topology: v6e:2x2x1
jax: 0.10.0
libtpu: 0.0.40
codegen_flags: <defaults>
</compile_context>

<pallas_src>
import functools

import jax
import jax.numpy as jnp
from jax.experimental import pallas as pl
from jax.experimental.pallas import tpu as pltpu


def _round_up(x, m):
    return ((x + m - 1) // m) * m


def _supcon_kernel(contrast_ref, row_lab_ref, col_lab_ref,
                   logits_ref, loss_num_ref, loss_cnt_ref, *,
                   inv_temp, loss_scale, tq, n_valid):
    """One (tq x Bp) row-tile of the SupConLoss forward."""
    i = pl.program_id(0)
    row_start = pl.multiple_of(i * tq, tq)

    # Anchor tile is a row-slice of the resident contrast block (128-aligned,
    # stays within (8,128) tiles) -> no separate anchor input / per-step DMA.
    a = contrast_ref[pl.ds(row_start, tq), :]         # (tq, Dp), native dtype
    c = contrast_ref[...]                             # (Bp, Dp), native dtype
    if inv_temp != 1.0:
        # fold 1/temperature into the small (tq, Dp) operand, not the (tq, Bp) slab
        a = a * jnp.asarray(inv_temp, a.dtype)

    # similarity tile on the MXU, f32 accumulation; A @ C^T (attention layout)
    sim = jax.lax.dot_general(a, c, (((1,), (1,)), ((), ())),
                              preferred_element_type=jnp.float32)   # (tq, Bp)

    # small (tq,1)/(1,Bp) iotas; comparisons broadcast to (tq, Bp)
    row = row_start + jax.lax.broadcasted_iota(jnp.int32, (tq, 1), 0)
    col = jax.lax.broadcasted_iota(jnp.int32, (1, sim.shape[1]), 1)
    not_diag = row != col

    if n_valid is not None:
        # batch was zero-padded up to a multiple of 128: padded columns must not
        # enter the row max, the softmax denominator, or the positive mask.
        col_ok = col < n_valid                                        # (1, Bp)
        denom_mask = jnp.logical_and(not_diag, col_ok)                # (tq, Bp)
        row_max = jnp.max(jnp.where(col_ok, sim, -jnp.inf),
                          axis=1, keepdims=True)                      # (tq, 1)
    else:
        denom_mask = not_diag
        row_max = jnp.max(sim, axis=1, keepdims=True)

    logits = sim - row_max                                            # (tq, Bp)
    logits_ref[...] = logits.astype(logits_ref.dtype)

    # masked softmax denominator: sum_{j != i, j valid} exp(logits_ij)
    # (can underflow to 0 -> log = -inf if every off-diagonal logit is hugely
    # negative; this matches the PyTorch reference, shared numerical edge case)
    denom = jnp.sum(jnp.where(denom_mask, jnp.exp(logits), 0.0),
                    axis=1, keepdims=True)                            # (tq, 1)
    log_denom = jnp.log(denom)

    # positives: same label, diagonal (and padded columns) excluded
    pos = jnp.logical_and(row_lab_ref[...] == col_lab_ref[...], denom_mask)
    pos_cnt = jnp.sum(pos.astype(jnp.float32), axis=1, keepdims=True)
    pos_logit_sum = jnp.sum(jnp.where(pos, logits, 0.0), axis=1, keepdims=True)

    # sum_{j in pos} (logits_ij - log_denom_i) without materializing log_prob
    valid = pos_cnt > 0.0
    mean_log_prob_pos = ((pos_logit_sum - pos_cnt * log_denom)
                         / jnp.where(valid, pos_cnt, 1.0))
    row_loss = (-loss_scale) * mean_log_prob_pos                      # (tq, 1)

    loss_num_ref[...] = jnp.where(valid, row_loss, 0.0)
    loss_cnt_ref[...] = valid.astype(jnp.float32)


def _pick_tile(Bp, Dp, itemsize, vmem_budget):
    """Largest 128-aligned row tile that keeps >=4 grid steps when possible
    (floor: one 128-row tile) and fits the per-generation VMEM budget."""
    max_tq = max(128, Bp // 4)           # guarantee a multi-step grid when B allows
    for tq in (2048, 1024, 512, 256, 128):
        if tq > Bp or Bp % tq != 0 or tq > max_tq:
            continue
        work = (2 * Bp * Dp * itemsize       # double-buffered resident contrast
                + 2 * tq * Bp * itemsize     # double-buffered logits out tile
                + 6 * tq * Bp * 4            # live f32 temporaries
                + 4 * tq * Dp * itemsize)    # anchor slice / scaled copy
        if work <= vmem_budget:
            return tq
    # TODO(synk): if even tq=128 exceeds the budget (B in the many-thousands),
    # a flash-style column-tiled variant is required; fall through regardless.
    return 128


def supcon_loss(features, labels, temperature=1.0, base_temperature=1.0):
    """features: [B, D] float (f32/bf16), labels: [B] int.
    Returns (logits [B, B], loss scalar) matching the PyTorch forward."""
    B, D = features.shape
    dtype = features.dtype
    itemsize = jnp.dtype(dtype).itemsize

    # pad lane (feature) dim and batch dim to multiples of 128 for lane-dense
    # loads/stores and a multi-step, megacore-shardable grid.
    Dp = _round_up(D, 128)
    Bp = _round_up(B, 128)
    f = features
    if Dp != D or Bp != B:
        f = jnp.pad(f, ((0, Bp - B), (0, Dp - D)))

    lab = labels.reshape(-1).astype(jnp.int32)
    if Bp != B:
        # sentinel labels for padded rows (never match real labels >= 0)
        lab = jnp.concatenate([lab, jnp.full((Bp - B,), -1, jnp.int32)])
    row_labels = lab.reshape(Bp, 1)       # sublane orientation
    col_labels = lab.reshape(1, Bp)       # lane-dense orientation

    # per-generation VMEM budget (v7x: 64 MiB phys -> ~46 MiB; v5e/v6e: ~92 MiB)
    try:
        vmem_cap = int(pltpu.get_tpu_info().vmem_capacity_bytes)
    except Exception:
        vmem_cap = 64 * (1 << 20)
    vmem_budget = int(vmem_cap * 0.72)

    tq = _pick_tile(Bp, Dp, itemsize, vmem_budget)
    grid = (Bp // tq,)

    kernel = functools.partial(
        _supcon_kernel,
        inv_temp=1.0 / float(temperature),
        loss_scale=float(temperature) / float(base_temperature),
        tq=tq,
        n_valid=(B if Bp != B else None))

    est = (2 * Bp * Dp * itemsize         # resident contrast block (buffers)
           + 2 * tq * Bp * itemsize       # logits out buffers
           + 6 * tq * Bp * 4              # live f32 temps
           + 4 * tq * Dp * itemsize       # anchor slice / scaled copy
           + (1 << 20))                   # labels / per-row outputs / slack
    vmem_limit = int(min(vmem_budget, max(32 * (1 << 20), int(est * 1.25))))

    logits, loss_num, loss_cnt = pl.pallas_call(
        kernel,
        out_shape=(jax.ShapeDtypeStruct((Bp, Bp), dtype),
                   jax.ShapeDtypeStruct((Bp, 1), jnp.float32),
                   jax.ShapeDtypeStruct((Bp, 1), jnp.float32)),
        grid=grid,
        in_specs=[
            pl.BlockSpec((Bp, Dp), lambda i: (0, 0)),   # resident contrast block
            pl.BlockSpec((tq, 1), lambda i: (i, 0)),    # row labels (tile)
            pl.BlockSpec((1, Bp), lambda i: (0, 0)),    # col labels (resident)
        ],
        out_specs=(
            pl.BlockSpec((tq, Bp), lambda i: (i, 0)),   # lane-dense logits tile
            pl.BlockSpec((tq, 1), lambda i: (i, 0)),    # per-row loss numerator
            pl.BlockSpec((tq, 1), lambda i: (i, 0)),    # per-row valid flag
        ),
        compiler_params=pltpu.CompilerParams(
            dimension_semantics=("parallel",),
            vmem_limit_bytes=vmem_limit),
    )(f, row_labels, col_labels)

    if Bp != B:
        logits = logits[:B, :B]
    # tiny final reduction = nanmean over rows (0/0 -> NaN iff no valid row,
    # matching torch .nanmean() of an all-NaN vector)
    loss = jnp.sum(loss_num) / jnp.sum(loss_cnt)
    return logits, loss


def _reference(features, labels, temperature=1.0, base_temperature=1.0):
    """Pure-JAX reference mirroring the PyTorch forward."""
    f = features.astype(jnp.float32)
    B = f.shape[0]
    mask = (labels[:, None] == labels[None, :]).astype(jnp.float32)
    sim = (f @ f.T) / temperature
    logits = sim - jnp.max(sim, axis=1, keepdims=True)
    logits_mask = 1.0 - jnp.eye(B, dtype=jnp.float32)
    mask = mask * logits_mask
    exp_logits = jnp.exp(logits) * logits_mask
    log_prob = logits - jnp.log(exp_logits.sum(1, keepdims=True))
    mean_log_prob_pos = (mask * log_prob).sum(1) / mask.sum(1)
    loss_rows = -(temperature / base_temperature) * mean_log_prob_pos
    valid = ~jnp.isnan(loss_rows)
    loss = jnp.sum(jnp.where(valid, loss_rows, 0.0)) / jnp.sum(valid)
    return logits, loss


if __name__ == "__main__":
    key = jax.random.PRNGKey(0)
    kf, kl, kf2, kl2 = jax.random.split(key, 4)

    # Test 1: 128-aligned shapes -> multi-step grid (pipelining + parallel axis)
    B, D = 256, 128
    features = jax.random.normal(kf, (B, D), dtype=jnp.float32)
    features = features / jnp.linalg.norm(features, axis=1, keepdims=True)
    labels = jax.random.randint(kl, (B,), 0, 4, dtype=jnp.int32)

    logits, loss = supcon_loss(features, labels, temperature=1.0, base_temperature=1.0)
    jax.block_until_ready((logits, loss))
    ref_logits, ref_loss = _reference(features, labels)
    assert jnp.allclose(logits, ref_logits, atol=2e-5), "logits mismatch (tiled)"
    assert jnp.allclose(loss, ref_loss, atol=1e-4), "loss mismatch (tiled)"

    # Test 2: small unaligned shapes -> padded batch/feature path + temperature
    B2, D2 = 8, 32
    features2 = jax.random.normal(kf2, (B2, D2), dtype=jnp.float32)
    features2 = features2 / jnp.linalg.norm(features2, axis=1, keepdims=True)
    labels2 = jax.random.randint(kl2, (B2,), 0, 2, dtype=jnp.int32)

    logits2, loss2 = supcon_loss(features2, labels2, temperature=0.5, base_temperature=1.0)
    jax.block_until_ready((logits2, loss2))
    ref_logits2, ref_loss2 = _reference(features2, labels2, temperature=0.5)
    assert jnp.allclose(logits2, ref_logits2, atol=2e-5), "logits mismatch (padded)"
    assert jnp.allclose(loss2, ref_loss2, atol=1e-4), "loss mismatch (padded)"

    print("KERNEL_OK")
</pallas_src>

<mosaic_0001>
module attributes {stable_mosaic.version = 11 : i64} {
  func.func @_supcon_kernel(%arg0: i32, %arg1: memref<256x128xf32, #tpu.memory_space<vmem>>, %arg2: memref<128x1xi32, #tpu.memory_space<vmem>>, %arg3: memref<1x256xi32, #tpu.memory_space<vmem>>, %arg4: memref<128x256xf32, #tpu.memory_space<vmem>>, %arg5: memref<128x1xf32, #tpu.memory_space<vmem>>, %arg6: memref<128x1xf32, #tpu.memory_space<vmem>>) attributes {dimension_semantics = [#tpu.dimension_semantics<parallel>], iteration_bounds = array<i64: 2>, scalar_prefetch = 0 : i64, scratch_operands = 0 : i64, tpu.core_type = #tpu.core_type<tc>, window_params = [{pipeline_mode = #tpu.pipeline_mode<synchronous>, transform_indices = @transform_0, window_bounds = array<i64: 256, 128>}, {transform_indices = @transform_1, window_bounds = array<i64: 128, 1>}, {pipeline_mode = #tpu.pipeline_mode<synchronous>, transform_indices = @transform_2, window_bounds = array<i64: 1, 256>}, {transform_indices = @transform_3, window_bounds = array<i64: 128, 256>}, {transform_indices = @transform_4, window_bounds = array<i64: 128, 1>}, {transform_indices = @transform_5, window_bounds = array<i64: 128, 1>}]} {
    %c128_i32 = arith.constant 128 : i32
    %0 = arith.muli %arg0, %c128_i32 : i32
    %1 = tpu.assume_multiple %0, 128 : i32
    %2 = arith.index_cast %1 : i32 to index
    %c0 = arith.constant 0 : index
    %3 = vector.load %arg1[%2, %c0] : memref<256x128xf32, #tpu.memory_space<vmem>>, vector<128x128xf32>
    %c0_0 = arith.constant 0 : index
    %c0_1 = arith.constant 0 : index
    %4 = vector.load %arg1[%c0_0, %c0_1] : memref<256x128xf32, #tpu.memory_space<vmem>>, vector<256x128xf32>
    %cst = arith.constant dense<0.000000e+00> : vector<128x256xf32>
    %5 = tpu.matmul %3, %4, %cst {dimension_numbers = #tpu.dot_dimension_numbers<[1], [1], [0], [0], [0, 0, 1, 0], [], []>} : vector<128x128xf32>, vector<256x128xf32>, vector<128x256xf32> -> vector<128x256xf32>
    %6 = tpu.iota {dimensions = array<i32: 0>} : vector<128x1xi32>
    %7 = vector.broadcast %1 : i32 to vector<128x1xi32>
    %8 = arith.addi %7, %6 : vector<128x1xi32>
    %9 = tpu.iota {dimensions = array<i32: 1>} : vector<1x256xi32>
    %10 = vector.broadcast %8 : vector<128x1xi32> to vector<128x256xi32>
    %11 = vector.broadcast %9 : vector<1x256xi32> to vector<128x256xi32>
    %12 = arith.cmpi ne, %10, %11 : vector<128x256xi32>
    %cst_2 = arith.constant dense<0xFF800000> : vector<128xf32>
    %13 = vector.multi_reduction <maximumf>, %5, %cst_2 [1] : vector<128x256xf32> to vector<128xf32>
    %14 = vector.shape_cast %13 : vector<128xf32> to vector<128x1xf32>
    %15 = vector.broadcast %14 : vector<128x1xf32> to vector<128x256xf32>
    %16 = arith.subf %5, %15 : vector<128x256xf32>
    %c0_3 = arith.constant 0 : index
    %c0_4 = arith.constant 0 : index
    %17 = vector.load %arg4[%c0_3, %c0_4] : memref<128x256xf32, #tpu.memory_space<vmem>>, vector<128x256xf32>
    tpu.vector_store %arg4[%c0_3, %c0_4], %16 {strides = array<i32>} : memref<128x256xf32, #tpu.memory_space<vmem>>, vector<128x256xf32>,
    %18 = math.exp %16 : vector<128x256xf32>
    %cst_5 = arith.constant 0.000000e+00 : f32
    %19 = vector.broadcast %cst_5 : f32 to vector<128x256xf32>
    %20 = arith.select %12, %18, %19 : vector<128x256xi1>, vector<128x256xf32>
    %cst_6 = arith.constant dense<0.000000e+00> : vector<128xf32>
    %21 = vector.multi_reduction <add>, %20, %cst_6 [1] : vector<128x256xf32> to vector<128xf32>
    %22 = vector.shape_cast %21 : vector<128xf32> to vector<128x1xf32>
    %23 = math.log %22 : vector<128x1xf32>
    %c0_7 = arith.constant 0 : index
    %c0_8 = arith.constant 0 : index
    %24 = vector.load %arg2[%c0_7, %c0_8] : memref<128x1xi32, #tpu.memory_space<vmem>>, vector<128x1xi32>
    %c0_9 = arith.constant 0 : index
    %c0_10 = arith.constant 0 : index
    %25 = vector.load %arg3[%c0_9, %c0_10] : memref<1x256xi32, #tpu.memory_space<vmem>>, vector<1x256xi32>
    %26 = vector.broadcast %24 : vector<128x1xi32> to vector<128x256xi32>
    %27 = vector.broadcast %25 : vector<1x256xi32> to vector<128x256xi32>
    %28 = arith.cmpi eq, %26, %27 : vector<128x256xi32>
    %29 = arith.andi %28, %12 : vector<128x256xi1>
    %30 = arith.extui %29 : vector<128x256xi1> to vector<128x256xi32>
    %31 = arith.sitofp %30 : vector<128x256xi32> to vector<128x256xf32>
    %cst_11 = arith.constant dense<0.000000e+00> : vector<128xf32>
    %32 = vector.multi_reduction <add>, %31, %cst_11 [1] : vector<128x256xf32> to vector<128xf32>
    %33 = vector.shape_cast %32 : vector<128xf32> to vector<128x1xf32>
    %cst_12 = arith.constant 0.000000e+00 : f32
    %34 = vector.broadcast %cst_12 : f32 to vector<128x256xf32>
    %35 = arith.select %29, %16, %34 : vector<128x256xi1>, vector<128x256xf32>
    %cst_13 = arith.constant dense<0.000000e+00> : vector<128xf32>
    %36 = vector.multi_reduction <add>, %35, %cst_13 [1] : vector<128x256xf32> to vector<128xf32>
    %37 = vector.shape_cast %36 : vector<128xf32> to vector<128x1xf32>
    %cst_14 = arith.constant 0.000000e+00 : f32
    %38 = vector.broadcast %cst_14 : f32 to vector<128x1xf32>
    %39 = arith.cmpf ogt, %33, %38 : vector<128x1xf32>
    %40 = arith.mulf %33, %23 : vector<128x1xf32>
    %41 = arith.subf %37, %40 : vector<128x1xf32>
    %cst_15 = arith.constant 1.000000e+00 : f32
    %42 = vector.broadcast %cst_15 : f32 to vector<128x1xf32>
    %43 = arith.select %39, %33, %42 : vector<128x1xi1>, vector<128x1xf32>
    %44 = arith.divf %41, %43 : vector<128x1xf32>
    %cst_16 = arith.constant -1.000000e+00 : f32
    %45 = vector.broadcast %cst_16 : f32 to vector<128x1xf32>
    %46 = arith.mulf %45, %44 : vector<128x1xf32>
    %cst_17 = arith.constant 0.000000e+00 : f32
    %47 = vector.broadcast %cst_17 : f32 to vector<128x1xf32>
    %48 = arith.select %39, %46, %47 : vector<128x1xi1>, vector<128x1xf32>
    %c0_18 = arith.constant 0 : index
    %c0_19 = arith.constant 0 : index
    %49 = vector.load %arg5[%c0_18, %c0_19] : memref<128x1xf32, #tpu.memory_space<vmem>>, vector<128x1xf32>
    tpu.vector_store %arg5[%c0_18, %c0_19], %48 {strides = array<i32>} : memref<128x1xf32, #tpu.memory_space<vmem>>, vector<128x1xf32>,
    %50 = arith.extui %39 : vector<128x1xi1> to vector<128x1xi32>
    %51 = arith.sitofp %50 : vector<128x1xi32> to vector<128x1xf32>
    %c0_20 = arith.constant 0 : index
    %c0_21 = arith.constant 0 : index
    %52 = vector.load %arg6[%c0_20, %c0_21] : memref<128x1xf32, #tpu.memory_space<vmem>>, vector<128x1xf32>
    tpu.vector_store %arg6[%c0_20, %c0_21], %51 {strides = array<i32>} : memref<128x1xf32, #tpu.memory_space<vmem>>, vector<128x1xf32>,
    return
  }
  func.func @transform_0(%arg0: i32) -> (i32, i32) {
    %c0_i32 = arith.constant 0 : i32
    %c0_i32_0 = arith.constant 0 : i32
    %c0_i32_1 = arith.constant 0 : i32
    return %c0_i32, %c0_i32_0 : i32, i32
  }
  func.func @transform_1(%arg0: i32) -> (i32, i32) {
    %c0_i32 = arith.constant 0 : i32
    %c0_i32_0 = arith.constant 0 : i32
    return %arg0, %c0_i32 : i32, i32
  }
  func.func @transform_2(%arg0: i32) -> (i32, i32) {
    %c0_i32 = arith.constant 0 : i32
    %c0_i32_0 = arith.constant 0 : i32
    %c0_i32_1 = arith.constant 0 : i32
    return %c0_i32, %c0_i32_0 : i32, i32
  }
  func.func @transform_3(%arg0: i32) -> (i32, i32) {
    %c0_i32 = arith.constant 0 : i32
    %c0_i32_0 = arith.constant 0 : i32
    return %arg0, %c0_i32 : i32, i32
  }
  func.func @transform_4(%arg0: i32) -> (i32, i32) {
    %c0_i32 = arith.constant 0 : i32
    %c0_i32_0 = arith.constant 0 : i32
    return %arg0, %c0_i32 : i32, i32
  }
  func.func @transform_5(%arg0: i32) -> (i32, i32) {
    %c0_i32 = arith.constant 0 : i32
    %c0_i32_0 = arith.constant 0 : i32
    return %arg0, %c0_i32 : i32, i32
  }
}

</mosaic_0001>

<llo_original>
// kernel: tpu_custom_call.1
$region0: #{tpu_custom_call.1}
  #allocation0 [shape = 'u32[]', space=smem, size = 0x4, offset = 0x4, fixed_abs, tag = 'smem constant byte address 0x4 - core index']
  #allocation1 [shape = 'u32[144,128]{1,0:T(1,128)}', space=vmem, size = 0x12000, scoped, tag = 'internal scratch']
  %s0 = inlined_call_operand.vmem [shape: f32[256,128], index: 0, kind: input, shape index: {}]
  %s1 = inlined_call_operand.vmem [shape: s32[256,1], index: 1, kind: input, shape index: {}]
  %s2 = inlined_call_operand.vmem [shape: s32[1,256], index: 2, kind: input, shape index: {}]
  %s3 = inlined_call_operand.hbm [shape: f32[256,256], index: 3, kind: output, shape index: {0}]
  %s4 = inlined_call_operand.vmem [shape: f32[256,1], index: 4, kind: output, shape index: {1}]
  %s5 = inlined_call_operand.vmem [shape: f32[256,1], index: 5, kind: output, shape index: {2}]
  %6 = xla_tuple %s3, %s4, %s5
  %s7 = sld [smem:[#allocation0]]
  $region61: #{tpu_custom_call.1} parent=0
    _
  %s9 = ssub.s32 1, %s7
  %s10 = scalar_select 0, %s9, %s7
  $region1: #{tpu_custom_call.1} parent=0
    #allocation2 [shape = 'u8[262144]{0}', space=vmem, size = 0x40000, scoped, tag = 'output window, operand 0']
    #allocation3 [shape = 's32[2]{0}', space=sflag, size = 0x8, scoped, tag = 'scoped memory for tpu_custom_call.1']
    %11 = vsyncpa [#allocation3], 0
    %s12 = scalar_lea.sflag [#allocation3], 1
    %13 = vsyncpa %s12, 0
    loop: start=0, step=1, limit=4
    $region2: #{tpu_custom_call.1} parent=1 // loop_pre_header
      _
    $region3: #{tpu_custom_call.1} parent=1 // loop_header
      %s15 = sphi 0, %s19
      %p16 = scmp.ge.s32.totalorder %s15, 4
      %s23 = sphi 0, %s23
      %s25 = sphi 0, %s23
      %s26 = sphi 0, %s25
      %s40 = sphi 0, %s26
      %s46 = sphi 0, %s48
      %s49 = sphi 0, %s46
      %s50 = sphi 0, %s49
      %s66 = sphi 0, %s50
      %s70 = sphi 0, %s70
      %s72 = sphi 0, %s70
      %s73 = sphi 0, %s72
      %s87 = sphi 0, %s73
      %s93 = sphi 0, %s95
      %s96 = sphi 0, %s93
      %s97 = sphi 0, %s96
      %s113 = sphi 0, %s97
      %s119 = sphi 0, %s121
      %s122 = sphi 0, %s119
      %s123 = sphi 0, %s122
      %s139 = sphi 0, %s123
      %s145 = sphi 0, %s147
      %s148 = sphi 0, %s145
      %s149 = sphi 0, %s148
      %s165 = sphi 0, %s149
    $region4: #{tpu_custom_call.1} parent=1 // loop_header_branch
      %18 = sbr.rel (%p16) target = $region8
    $region5: #{tpu_custom_call.1} parent=1 // loop_body
      %s20 = ssub.s32 %s15, 1
      %s21 = ssub.s32 %s15, 2
      %s22 = sadd.s32 %s15, 1
      %s24 = sadd.s32 %s23, 1
      %p27 = scmp.eq.s32.totalorder %s15, 1
      %p28 = scmp.ne.s32.totalorder %s23, %s25
      %p29 = scmp.eq.s32.totalorder %s15, 0
      %p30 = por %p28, %p29
      %p31 = scmp.ne.s32.totalorder %s23, %s25
      %p32 = scmp.eq.s32.totalorder %s20, 1
      %p33 = por %p31, %p32
      %p34 = scmp.ne.s32.totalorder %s25, %s26
      %p35 = scmp.eq.s32.totalorder %s20, 0
      %p36 = por %p34, %p35
      %p37 = scmp.ne.s32.totalorder %s25, %s26
      %p38 = scmp.eq.s32.totalorder %s21, 1
      %p39 = por %p37, %p38
      %p41 = scmp.ne.s32.totalorder %s26, %s40
      %p42 = scmp.eq.s32.totalorder %s21, 0
      %p43 = por %p41, %p42
      %s44 = ssub.s32 %s15, %s22
      %p45 = scmp.eq.s32.totalorder %s44, 0
      %s47 = sadd.s32 %s46, 1
      %s48 = scalar_select %p45, %s46, %s47
      %p51 = pneg %p45
      %p52 = scmp.eq.s32.totalorder %s15, 1
      %p53 = por %p51, %p52
      %p54 = scmp.ne.s32.totalorder %s46, %s49
      %p55 = scmp.eq.s32.totalorder %s15, 0
      %p56 = por %p54, %p55
      %p57 = scmp.ne.s32.totalorder %s46, %s49
      %p58 = scmp.eq.s32.totalorder %s20, 1
      %p59 = por %p57, %p58
      %p60 = scmp.ne.s32.totalorder %s49, %s50
      %p61 = scmp.eq.s32.totalorder %s20, 0
      %p62 = por %p60, %p61
      %p63 = scmp.ne.s32.totalorder %s49, %s50
      %p64 = scmp.eq.s32.totalorder %s21, 1
      %p65 = por %p63, %p64
      %p67 = scmp.ne.s32.totalorder %s50, %s66
      %p68 = scmp.eq.s32.totalorder %s21, 0
      %p69 = por %p67, %p68
      %s71 = sadd.s32 %s70, 1
      %p74 = scmp.eq.s32.totalorder %s15, 1
      %p75 = scmp.ne.s32.totalorder %s70, %s72
      %p76 = scmp.eq.s32.totalorder %s15, 0
      %p77 = por %p75, %p76
      %p78 = scmp.ne.s32.totalorder %s70, %s72
      %p79 = scmp.eq.s32.totalorder %s20, 1
      %p80 = por %p78, %p79
      %p81 = scmp.ne.s32.totalorder %s72, %s73
      %p82 = scmp.eq.s32.totalorder %s20, 0
      %p83 = por %p81, %p82
      %p84 = scmp.ne.s32.totalorder %s72, %s73
      %p85 = scmp.eq.s32.totalorder %s21, 1
      %p86 = por %p84, %p85
      %p88 = scmp.ne.s32.totalorder %s73, %s87
      %p89 = scmp.eq.s32.totalorder %s21, 0
      %p90 = por %p88, %p89
      %s91 = ssub.s32 %s15, %s22
      %p92 = scmp.eq.s32.totalorder %s91, 0
      %s94 = sadd.s32 %s93, 1
      %s95 = scalar_select %p92, %s93, %s94
      %p98 = pneg %p92
      %p99 = scmp.eq.s32.totalorder %s15, 1
      %p100 = por %p98, %p99
      %p101 = scmp.ne.s32.totalorder %s93, %s96
      %p102 = scmp.eq.s32.totalorder %s15, 0
      %p103 = por %p101, %p102
      %p104 = scmp.ne.s32.totalorder %s93, %s96
      %p105 = scmp.eq.s32.totalorder %s20, 1
      %p106 = por %p104, %p105
      %p107 = scmp.ne.s32.totalorder %s96, %s97
      %p108 = scmp.eq.s32.totalorder %s20, 0
      %p109 = por %p107, %p108
      %p110 = scmp.ne.s32.totalorder %s96, %s97
      %p111 = scmp.eq.s32.totalorder %s21, 1
      %p112 = por %p110, %p111
      %p114 = scmp.ne.s32.totalorder %s97, %s113
      %p115 = scmp.eq.s32.totalorder %s21, 0
      %p116 = por %p114, %p115
      %s117 = ssub.s32 %s15, %s22
      %p118 = scmp.eq.s32.totalorder %s117, 0
      %s120 = sadd.s32 %s119, 1
      %s121 = scalar_select %p118, %s119, %s120
      %p124 = pneg %p118
      %p125 = scmp.eq.s32.totalorder %s15, 1
      %p126 = por %p124, %p125
      %p127 = scmp.ne.s32.totalorder %s119, %s122
      %p128 = scmp.eq.s32.totalorder %s15, 0
      %p129 = por %p127, %p128
      %p130 = scmp.ne.s32.totalorder %s119, %s122
      %p131 = scmp.eq.s32.totalorder %s20, 1
      %p132 = por %p130, %p131
      %p133 = scmp.ne.s32.totalorder %s122, %s123
      %p134 = scmp.eq.s32.totalorder %s20, 0
      %p135 = por %p133, %p134
      %p136 = scmp.ne.s32.totalorder %s122, %s123
      %p137 = scmp.eq.s32.totalorder %s21, 1
      %p138 = por %p136, %p137
      %p140 = scmp.ne.s32.totalorder %s123, %s139
      %p141 = scmp.eq.s32.totalorder %s21, 0
      %p142 = por %p140, %p141
      %s143 = ssub.s32 %s15, %s22
      %p144 = scmp.eq.s32.totalorder %s143, 0
      %s146 = sadd.s32 %s145, 1
      %s147 = scalar_select %p144, %s145, %s146
      %p150 = pneg %p144
      %p151 = scmp.eq.s32.totalorder %s15, 1
      %p152 = por %p150, %p151
      %p153 = scmp.ne.s32.totalorder %s145, %s148
      %p154 = scmp.eq.s32.totalorder %s15, 0
      %p155 = por %p153, %p154
      %p156 = scmp.ne.s32.totalorder %s145, %s148
      %p157 = scmp.eq.s32.totalorder %s20, 1
      %p158 = por %p156, %p157
      %p159 = scmp.ne.s32.totalorder %s148, %s149
      %p160 = scmp.eq.s32.totalorder %s20, 0
      %p161 = por %p159, %p160
      %p162 = scmp.ne.s32.totalorder %s148, %s149
      %p163 = scmp.eq.s32.totalorder %s21, 1
      %p164 = por %p162, %p163
      %p166 = scmp.ne.s32.totalorder %s149, %s165
      %p167 = scmp.eq.s32.totalorder %s21, 0
      %p168 = por %p166, %p167
      %p169 = scmp.le.s32.totalorder 1, %s15
      %p170 = scmp.lt.s32.totalorder %s15, 3
      %p171 = pnand %p169, %p170
      %p172 = pneg %p171
      // Predicated region
      $region9: #{tpu_custom_call.1} parent=5 // pred_check
        _
      $region10: #{tpu_custom_call.1} parent=5 // pred_check_branch
        %174 = sbr.rel (%p171) target = $region12
      $region11: #{tpu_custom_call.1} parent=5 // pred_region
        %s175 = ssub.s32 %s15, 1
        // Predicated region
        $region13: #{tpu_custom_call.1} parent=11 // pred_check
          %p176 = pneg %p36
        $region14: #{tpu_custom_call.1} parent=11 // pred_check_branch
          %178 = sbr.rel (%p176) target = $region16
        $region15: #{tpu_custom_call.1} parent=11 // pred_region
          _
        $region16: #{tpu_custom_call.1} parent=11 // pred_fallthru
          _
        // Predicated region
        $region17: #{tpu_custom_call.1} parent=11 // pred_check
          %p179 = pneg %p83
        $region18: #{tpu_custom_call.1} parent=11 // pred_check_branch
          %181 = sbr.rel (%p179) target = $region20
        $region19: #{tpu_custom_call.1} parent=11 // pred_region
          _
        $region20: #{tpu_custom_call.1} parent=11 // pred_fallthru
          _
      $region12: #{tpu_custom_call.1} parent=5 // pred_fallthru
        _
      %p182 = scmp.lt.s32.totalorder %s15, 2
      // Predicated region
      $region21: #{tpu_custom_call.1} parent=5 // pred_check
        %p183 = pneg %p182
      $region22: #{tpu_custom_call.1} parent=5 // pred_check_branch
        %185 = sbr.rel (%p183) target = $region24
      $region23: #{tpu_custom_call.1} parent=5 // pred_region
        // Predicated region
        $region25: #{tpu_custom_call.1} parent=23 // pred_check
          %p186 = pneg %p56
        $region26: #{tpu_custom_call.1} parent=23 // pred_check_branch
          %188 = sbr.rel (%p186) target = $region28
        $region27: #{tpu_custom_call.1} parent=23 // pred_region
          %s189 = smul.u32 16, %s15
          %p190 = scmp.lt.s32.totalorder %s189, 31
          %s191 = scalar_select %p190, %s189, 31
          %s192 = smul.addr %s191, 8
          %s193 = scalar_lea.vmem %s1, %s192
          %s194 = smul.u32 16, %s15
        $region28: #{tpu_custom_call.1} parent=23 // pred_fallthru
          _
      $region24: #{tpu_custom_call.1} parent=5 // pred_fallthru
        _
      %p195 = scmp.le.s32.totalorder 1, %s15
      %p196 = scmp.lt.s32.totalorder %s15, 3
      %p197 = pnand %p195, %p196
      %p198 = pneg %p197
      // Predicated region
      $region29: #{tpu_custom_call.1} parent=5 // pred_check
        _
      $region30: #{tpu_custom_call.1} parent=5 // pred_check_branch
        %200 = sbr.rel (%p197) target = $region32
      $region31: #{tpu_custom_call.1} parent=5 // pred_region
        %s201 = ssub.s32 %s15, 1
        %p202 = pneg %p36
        %p203 = pneg %p33
        %s204 = smul.u32 16, %s20
        %p205 = scmp.lt.s32.totalorder %s204, 31
        %s206 = scalar_select %p205, %s204, 31
        %s207 = smul.addr %s206, 8
        %s208 = scalar_lea.vmem %s1, %s207
        %p209 = pneg %p62
        %p210 = pneg %p59
        %p211 = pneg %p83
        %p212 = pneg %p80
        %p213 = pneg %p109
        %p214 = pneg %p106
        %s215 = sand.u32 %s96, 1
        %s216 = scalar_lea.sflag [#allocation3], %s215
        %s217 = sand.u32 %s96, 1
        %s218 = smul.addr %s217, 256
        %s219 = scalar_lea.vmem [#allocation2], %s218
        %p220 = pneg %p135
        %p221 = pneg %p132
        %s222 = smul.u32 16, %s20
        %p223 = scmp.lt.s32.totalorder %s222, 31
        %s224 = scalar_select %p223, %s222, 31
        %s225 = smul.addr %s224, 8
        %s226 = scalar_lea.vmem %s4, %s225
        %p227 = pneg %p161
        %p228 = pneg %p158
        %s229 = smul.u32 16, %s20
        %p230 = scmp.lt.s32.totalorder %s229, 31
        %s231 = scalar_select %p230, %s229, 31
        %s232 = smul.addr %s231, 8
        %s233 = scalar_lea.vmem %s5, %s232
        %s234 = smul.u32 16, %s20
        %p235 = scmp.lt.s32.totalorder %s234, 31
        %s236 = scalar_select %p235, %s234, 31
        %s237 = smul.addr %s236, 8
        %s238 = scalar_lea.vmem %s1, %s237
        %s239 = smul.u32 16, %s20
        %s240 = smul.u32 16, %s20
        %s241 = smul.u32 16, %s20
        %p242 = scmp.lt.s32.totalorder %s241, 31
        %s243 = scalar_select %p242, %s241, 31
        %s244 = smul.addr %s243, 8
        %s245 = scalar_lea.vmem %s4, %s244
        %s246 = smul.u32 16, %s20
        %s247 = smul.u32 16, %s20
        %p248 = scmp.lt.s32.totalorder %s247, 31
        %s249 = scalar_select %p248, %s247, 31
        %s250 = smul.addr %s249, 8
        %s251 = scalar_lea.vmem %s5, %s250
        %s252 = smul.u32 16, %s20
        %s253 = smul.u32 %s20, 128
        %s254 = scalar_lea.vmem %s0, %s253
        %v255 = vld [vmem:[%s254] sm:$0xff]
        %v256 = vld [vmem:[%s254 + $0x8] sm:$0xff]
        %v257 = vld [vmem:[%s254 + $0x10] sm:$0xff]
        %v258 = vld [vmem:[%s254 + $0x18] sm:$0xff]
        %v259 = vld [vmem:[%s254 + $0x20] sm:$0xff]
        %v260 = vld [vmem:[%s254 + $0x28] sm:$0xff]
        %v261 = vld [vmem:[%s254 + $0x30] sm:$0xff]
        %v262 = vld [vmem:[%s254 + $0x38] sm:$0xff]
        %v263 = vld [vmem:[%s254 + $0x40] sm:$0xff]
        %v264 = vld [vmem:[%s254 + $0x48] sm:$0xff]
        %v265 = vld [vmem:[%s254 + $0x50] sm:$0xff]
        %v266 = vld [vmem:[%s254 + $0x58] sm:$0xff]
        %v267 = vld [vmem:[%s254 + $0x60] sm:$0xff]
        %v268 = vld [vmem:[%s254 + $0x68] sm:$0xff]
        %v269 = vld [vmem:[%s254 + $0x70] sm:$0xff]
        %v270 = vld [vmem:[%s254 + $0x78] sm:$0xff]
        %v271 = vld [vmem:[%s0] sm:$0xff]
        %v272 = vld [vmem:[%s0 + $0x8] sm:$0xff]
        %v273 = vld [vmem:[%s0 + $0x10] sm:$0xff]
        %v274 = vld [vmem:[%s0 + $0x18] sm:$0xff]
        %v275 = vld [vmem:[%s0 + $0x20] sm:$0xff]
        %v276 = vld [vmem:[%s0 + $0x28] sm:$0xff]
        %v277 = vld [vmem:[%s0 + $0x30] sm:$0xff]
        %v278 = vld [vmem:[%s0 + $0x38] sm:$0xff]
        %v279 = vld [vmem:[%s0 + $0x40] sm:$0xff]
        %v280 = vld [vmem:[%s0 + $0x48] sm:$0xff]
        %v281 = vld [vmem:[%s0 + $0x50] sm:$0xff]
        %v282 = vld [vmem:[%s0 + $0x58] sm:$0xff]
        %v283 = vld [vmem:[%s0 + $0x60] sm:$0xff]
        %v284 = vld [vmem:[%s0 + $0x68] sm:$0xff]
        %v285 = vld [vmem:[%s0 + $0x70] sm:$0xff]
        %v286 = vld [vmem:[%s0 + $0x78] sm:$0xff]
        %v287 = vld [vmem:[%s0 + $0x80] sm:$0xff]
        %v288 = vld [vmem:[%s0 + $0x88] sm:$0xff]
        %v289 = vld [vmem:[%s0 + $0x90] sm:$0xff]
        %v290 = vld [vmem:[%s0 + $0x98] sm:$0xff]
        %v291 = vld [vmem:[%s0 + $0xa0] sm:$0xff]
        %v292 = vld [vmem:[%s0 + $0xa8] sm:$0xff]
        %v293 = vld [vmem:[%s0 + $0xb0] sm:$0xff]
        %v294 = vld [vmem:[%s0 + $0xb8] sm:$0xff]
        %v295 = vld [vmem:[%s0 + $0xc0] sm:$0xff]
        %v296 = vld [vmem:[%s0 + $0xc8] sm:$0xff]
        %v297 = vld [vmem:[%s0 + $0xd0] sm:$0xff]
        %v298 = vld [vmem:[%s0 + $0xd8] sm:$0xff]
        %v299 = vld [vmem:[%s0 + $0xe0] sm:$0xff]
        %v300 = vld [vmem:[%s0 + $0xe8] sm:$0xff]
        %v301 = vld [vmem:[%s0 + $0xf0] sm:$0xff]
        %v302 = vld [vmem:[%s0 + $0xf8] sm:$0xff]
        %303 = vmatprep.subr.mxu0 0.0
        %304 = vmatpush1.xpose.msra.mxu0 %v286
        %305 = vmatprep.subr.mxu0 0.0
        %306 = vmatpush1.xpose.msra.mxu0 %v285
        %307 = vmatprep.subr.mxu0 0.0
        %308 = vmatpush1.xpose.msra.mxu0 %v284
        %309 = vmatprep.subr.mxu0 0.0
        %310 = vmatpush1.xpose.msra.mxu0 %v283
        %311 = vmatprep.subr.mxu0 0.0
        %312 = vmatpush1.xpose.msra.mxu0 %v282
        %313 = vmatprep.subr.mxu0 0.0
        %314 = vmatpush1.xpose.msra.mxu0 %v281
        %315 = vmatprep.subr.mxu0 0.0
        %316 = vmatpush1.xpose.msra.mxu0 %v280
        %317 = vmatprep.subr.mxu0 0.0
        %318 = vmatpush1.xpose.msra.mxu0 %v279
        %319 = vmatprep.subr.mxu0 0.0
        %320 = vmatpush1.xpose.msra.mxu0 %v278
        %321 = vmatprep.subr.mxu0 0.0
        %322 = vmatpush1.xpose.msra.mxu0 %v277
        %323 = vmatprep.subr.mxu0 0.0
        %324 = vmatpush1.xpose.msra.mxu0 %v276
        %325 = vmatprep.subr.mxu0 0.0
        %326 = vmatpush1.xpose.msra.mxu0 %v275
        %327 = vmatprep.subr.mxu0 0.0
        %328 = vmatpush1.xpose.msra.mxu0 %v274
        %329 = vmatprep.subr.mxu0 0.0
        %330 = vmatpush1.xpose.msra.mxu0 %v273
        %331 = vmatprep.subr.mxu0 0.0
        %332 = vmatpush1.xpose.msra.mxu0 %v272
        %333 = vmatprep.subr.mxu0 0.0
        %334 = vmatpush1.xpose.msra.mxu0 %v271
        %335 = vmatprep.subr.mxu0 0.0
        %336 = vmatpush2.xpose.msra.mxu0 %v302
        %337 = vmatprep.subr.mxu0 0.0
        %338 = vmatpush2.xpose.msra.mxu0 %v301
        %339 = vmatprep.subr.mxu0 0.0
        %340 = vmatpush2.xpose.msra.mxu0 %v300
        %341 = vmatprep.subr.mxu0 0.0
        %342 = vmatpush2.xpose.msra.mxu0 %v299
        %343 = vmatprep.subr.mxu0 0.0
        %344 = vmatpush2.xpose.msra.mxu0 %v298
        %345 = vmatprep.subr.mxu0 0.0
        %346 = vmatpush2.xpose.msra.mxu0 %v297
        %347 = vmatprep.subr.mxu0 0.0
        %348 = vmatpush2.xpose.msra.mxu0 %v296
        %349 = vmatprep.subr.mxu0 0.0
        %350 = vmatpush2.xpose.msra.mxu0 %v295
        %351 = vmatprep.subr.mxu0 0.0
        %352 = vmatpush2.xpose.msra.mxu0 %v294
        %353 = vmatprep.subr.mxu0 0.0
        %354 = vmatpush2.xpose.msra.mxu0 %v293
        %355 = vmatprep.subr.mxu0 0.0
        %356 = vmatpush2.xpose.msra.mxu0 %v292
        %357 = vmatprep.subr.mxu0 0.0
        %358 = vmatpush2.xpose.msra.mxu0 %v291
        %359 = vmatprep.subr.mxu0 0.0
        %360 = vmatpush2.xpose.msra.mxu0 %v290
        %361 = vmatprep.subr.mxu0 0.0
        %362 = vmatpush2.xpose.msra.mxu0 %v289
        %363 = vmatprep.subr.mxu0 0.0
        %364 = vmatpush2.xpose.msra.mxu0 %v288
        %365 = vmatprep.subr.mxu0 0.0
        %366 = vmatpush2.xpose.msra.mxu0 %v287
        %367 = vmatprep.mubr.f32.mxu0 0.0
        %368 = vmatmul.mubr.f32.gmra.mxu0 %v255
        %v369 = vpop.f32.mrf.mxu0
        %v370 = vadd.f32 0.0, %v369
        %v371 = vpop.f32.mrf.mxu0
        %v372 = vadd.f32 0.0, %v371
        %373 = vmatprep.mubr.f32.mxu0 0.0
        %374 = vmatmul.mubr.f32.gmra.mxu0 %v256
        %v375 = vpop.f32.mrf.mxu0
        %v376 = vadd.f32 0.0, %v375
        %v377 = vpop.f32.mrf.mxu0
        %v378 = vadd.f32 0.0, %v377
        %379 = vmatprep.mubr.f32.mxu0 0.0
        %380 = vmatmul.mubr.f32.gmra.mxu0 %v257
        %v381 = vpop.f32.mrf.mxu0
        %v382 = vadd.f32 0.0, %v381
        %v383 = vpop.f32.mrf.mxu0
        %v384 = vadd.f32 0.0, %v383
        %385 = vmatprep.mubr.f32.mxu0 0.0
        %386 = vmatmul.mubr.f32.gmra.mxu0 %v258
        %v387 = vpop.f32.mrf.mxu0
        %v388 = vadd.f32 0.0, %v387
        %v389 = vpop.f32.mrf.mxu0
        %v390 = vadd.f32 0.0, %v389
        %391 = vmatprep.mubr.f32.mxu0 0.0
        %392 = vmatmul.mubr.f32.gmra.mxu0 %v259
        %v393 = vpop.f32.mrf.mxu0
        %v394 = vadd.f32 0.0, %v393
        %v395 = vpop.f32.mrf.mxu0
        %v396 = vadd.f32 0.0, %v395
        %397 = vmatprep.mubr.f32.mxu0 0.0
        %398 = vmatmul.mubr.f32.gmra.mxu0 %v260
        %v399 = vpop.f32.mrf.mxu0
        %v400 = vadd.f32 0.0, %v399
        %v401 = vpop.f32.mrf.mxu0
        %v402 = vadd.f32 0.0, %v401
        %403 = vmatprep.mubr.f32.mxu0 0.0
        %404 = vmatmul.mubr.f32.gmra.mxu0 %v261
        %v405 = vpop.f32.mrf.mxu0
        %v406 = vadd.f32 0.0, %v405
        %v407 = vpop.f32.mrf.mxu0
        %v408 = vadd.f32 0.0, %v407
        %409 = vmatprep.mubr.f32.mxu0 0.0
        %410 = vmatmul.mubr.f32.gmra.mxu0 %v262
        %v411 = vpop.f32.mrf.mxu0
        %v412 = vadd.f32 0.0, %v411
        %v413 = vpop.f32.mrf.mxu0
        %v414 = vadd.f32 0.0, %v413
        %415 = vmatprep.mubr.f32.mxu0 0.0
        %416 = vmatmul.mubr.f32.gmra.mxu0 %v263
        %v417 = vpop.f32.mrf.mxu0
        %v418 = vadd.f32 0.0, %v417
        %v419 = vpop.f32.mrf.mxu0
        %v420 = vadd.f32 0.0, %v419
        %421 = vmatprep.mubr.f32.mxu0 0.0
        %422 = vmatmul.mubr.f32.gmra.mxu0 %v264
        %v423 = vpop.f32.mrf.mxu0
        %v424 = vadd.f32 0.0, %v423
        %v425 = vpop.f32.mrf.mxu0
        %v426 = vadd.f32 0.0, %v425
        %427 = vmatprep.mubr.f32.mxu0 0.0
        %428 = vmatmul.mubr.f32.gmra.mxu0 %v265
        %v429 = vpop.f32.mrf.mxu0
        %v430 = vadd.f32 0.0, %v429
        %v431 = vpop.f32.mrf.mxu0
        %v432 = vadd.f32 0.0, %v431
        %433 = vmatprep.mubr.f32.mxu0 0.0
        %434 = vmatmul.mubr.f32.gmra.mxu0 %v266
        %v435 = vpop.f32.mrf.mxu0
        %v436 = vadd.f32 0.0, %v435
        %v437 = vpop.f32.mrf.mxu0
        %v438 = vadd.f32 0.0, %v437
        %439 = vmatprep.mubr.f32.mxu0 0.0
        %440 = vmatmul.mubr.f32.gmra.mxu0 %v267
        %v441 = vpop.f32.mrf.mxu0
        %v442 = vadd.f32 0.0, %v441
        %v443 = vpop.f32.mrf.mxu0
        %v444 = vadd.f32 0.0, %v443
        %445 = vmatprep.mubr.f32.mxu0 0.0
        %446 = vmatmul.mubr.f32.gmra.mxu0 %v268
        %v447 = vpop.f32.mrf.mxu0
        %v448 = vadd.f32 0.0, %v447
        %v449 = vpop.f32.mrf.mxu0
        %v450 = vadd.f32 0.0, %v449
        %451 = vmatprep.mubr.f32.mxu0 0.0
        %452 = vmatmul.mubr.f32.gmra.mxu0 %v269
        %v453 = vpop.f32.mrf.mxu0
        %v454 = vadd.f32 0.0, %v453
        %v455 = vpop.f32.mrf.mxu0
        %v456 = vadd.f32 0.0, %v455
        %457 = vmatprep.mubr.f32.mxu0 0.0
        %458 = vmatmul.mubr.f32.gmra.mxu0 %v270
        %v459 = vpop.f32.mrf.mxu0
        %v460 = vadd.f32 0.0, %v459
        %v461 = vpop.f32.mrf.mxu0
        %v462 = vadd.f32 0.0, %v461
        %463 = vdwg.mxu0
        %v464 = vlaneseq
        %v465 = vshrl.u32 %v464, 7
        %v466 = vadd.s32 %v465, 8
        %v467 = vadd.s32 %v465, 16
        %v468 = vadd.s32 %v465, 24
        %v469 = vadd.s32 %v465, 32
        %v470 = vadd.s32 %v465, 40
        %v471 = vadd.s32 %v465, 48
        %v472 = vadd.s32 %v465, 56
        %v473 = vadd.s32 %v465, 64
        %v474 = vadd.s32 %v465, 72
        %v475 = vadd.s32 %v465, 80
        %v476 = vadd.s32 %v465, 88
        %v477 = vadd.s32 %v465, 96
        %v478 = vadd.s32 %v465, 104
        %v479 = vadd.s32 %v465, 112
        %v480 = vadd.s32 %v465, 120
        %v481 = vstv %s253
        %v482 = vadd.s32 %v481, %v465
        %v483 = vadd.s32 %v481, %v466
        %v484 = vadd.s32 %v481, %v467
        %v485 = vadd.s32 %v481, %v468
        %v486 = vadd.s32 %v481, %v469
        %v487 = vadd.s32 %v481, %v470
        %v488 = vadd.s32 %v481, %v471
        %v489 = vadd.s32 %v481, %v472
        %v490 = vadd.s32 %v481, %v473
        %v491 = vadd.s32 %v481, %v474
        %v492 = vadd.s32 %v481, %v475
        %v493 = vadd.s32 %v481, %v476
        %v494 = vadd.s32 %v481, %v477
        %v495 = vadd.s32 %v481, %v478
        %v496 = vadd.s32 %v481, %v479
        %v497 = vadd.s32 %v481, %v480
        %v498 = vlaneseq
        %v499 = vand.u32 %v498, 127
        %v500 = vadd.s32 %v499, 128
        %vm501 = vcmp.ne.s32.totalorder %v482, %v499
        %vm502 = vcmp.ne.s32.totalorder %v482, %v500
        %vm503 = vcmp.ne.s32.totalorder %v483, %v499
        %vm504 = vcmp.ne.s32.totalorder %v483, %v500
        %vm505 = vcmp.ne.s32.totalorder %v484, %v499
        %vm506 = vcmp.ne.s32.totalorder %v484, %v500
        %vm507 = vcmp.ne.s32.totalorder %v485, %v499
        %vm508 = vcmp.ne.s32.totalorder %v485, %v500
        %vm509 = vcmp.ne.s32.totalorder %v486, %v499
        %vm510 = vcmp.ne.s32.totalorder %v486, %v500
        %vm511 = vcmp.ne.s32.totalorder %v487, %v499
        %vm512 = vcmp.ne.s32.totalorder %v487, %v500
        %vm513 = vcmp.ne.s32.totalorder %v488, %v499
        %vm514 = vcmp.ne.s32.totalorder %v488, %v500
        %vm515 = vcmp.ne.s32.totalorder %v489, %v499
        %vm516 = vcmp.ne.s32.totalorder %v489, %v500
        %vm517 = vcmp.ne.s32.totalorder %v490, %v499
        %vm518 = vcmp.ne.s32.totalorder %v490, %v500
        %vm519 = vcmp.ne.s32.totalorder %v491, %v499
        %vm520 = vcmp.ne.s32.totalorder %v491, %v500
        %vm521 = vcmp.ne.s32.totalorder %v492, %v499
        %vm522 = vcmp.ne.s32.totalorder %v492, %v500
        %vm523 = vcmp.ne.s32.totalorder %v493, %v499
        %vm524 = vcmp.ne.s32.totalorder %v493, %v500
        %vm525 = vcmp.ne.s32.totalorder %v494, %v499
        %vm526 = vcmp.ne.s32.totalorder %v494, %v500
        %vm527 = vcmp.ne.s32.totalorder %v495, %v499
        %vm528 = vcmp.ne.s32.totalorder %v495, %v500
        %vm529 = vcmp.ne.s32.totalorder %v496, %v499
        %vm530 = vcmp.ne.s32.totalorder %v496, %v500
        %vm531 = vcmp.ne.s32.totalorder %v497, %v499
        %vm532 = vcmp.ne.s32.totalorder %v497, %v500
        %v533 = vmax.f32 %v370, %v372
        %534 = vmax.xlane.f32.xlu0 %v533
        %v535 = vpop.xlane.xlu0 %534
        %v536 = vmax.f32 %v376, %v378
        %537 = vmax.xlane.f32.xlu0 %v536
        %v538 = vpop.xlane.xlu0 %537
        %v539 = vmax.f32 %v382, %v384
        %540 = vmax.xlane.f32.xlu0 %v539
        %v541 = vpop.xlane.xlu0 %540
        %v542 = vmax.f32 %v388, %v390
        %543 = vmax.xlane.f32.xlu0 %v542
        %v544 = vpop.xlane.xlu0 %543
        %v545 = vmax.f32 %v394, %v396
        %546 = vmax.xlane.f32.xlu0 %v545
        %v547 = vpop.xlane.xlu0 %546
        %v548 = vmax.f32 %v400, %v402
        %549 = vmax.xlane.f32.xlu0 %v548
        %v550 = vpop.xlane.xlu0 %549
        %v551 = vmax.f32 %v406, %v408
        %552 = vmax.xlane.f32.xlu0 %v551
        %v553 = vpop.xlane.xlu0 %552
        %v554 = vmax.f32 %v412, %v414
        %555 = vmax.xlane.f32.xlu0 %v554
        %v556 = vpop.xlane.xlu0 %555
        %v557 = vmax.f32 %v418, %v420
        %558 = vmax.xlane.f32.xlu0 %v557
        %v559 = vpop.xlane.xlu0 %558
        %v560 = vmax.f32 %v424, %v426
        %561 = vmax.xlane.f32.xlu0 %v560
        %v562 = vpop.xlane.xlu0 %561
        %v563 = vmax.f32 %v430, %v432
        %564 = vmax.xlane.f32.xlu0 %v563
        %v565 = vpop.xlane.xlu0 %564
        %v566 = vmax.f32 %v436, %v438
        %567 = vmax.xlane.f32.xlu0 %v566
        %v568 = vpop.xlane.xlu0 %567
        %v569 = vmax.f32 %v442, %v444
        %570 = vmax.xlane.f32.xlu0 %v569
        %v571 = vpop.xlane.xlu0 %570
        %v572 = vmax.f32 %v448, %v450
        %573 = vmax.xlane.f32.xlu0 %v572
        %v574 = vpop.xlane.xlu0 %573
        %v575 = vmax.f32 %v454, %v456
        %576 = vmax.xlane.f32.xlu0 %v575
        %v577 = vpop.xlane.xlu0 %576
        %v578 = vmax.f32 %v460, %v462
        %579 = vmax.xlane.f32.xlu0 %v578
        %v580 = vpop.xlane.xlu0 %579
        %v581 = vsub.f32 %v370, %v535
        %v582 = vsub.f32 %v372, %v535
        %v583 = vsub.f32 %v376, %v538
        %v584 = vsub.f32 %v378, %v538
        %v585 = vsub.f32 %v382, %v541
        %v586 = vsub.f32 %v384, %v541
        %v587 = vsub.f32 %v388, %v544
        %v588 = vsub.f32 %v390, %v544
        %v589 = vsub.f32 %v394, %v547
        %v590 = vsub.f32 %v396, %v547
        %v591 = vsub.f32 %v400, %v550
        %v592 = vsub.f32 %v402, %v550
        %v593 = vsub.f32 %v406, %v553
        %v594 = vsub.f32 %v408, %v553
        %v595 = vsub.f32 %v412, %v556
        %v596 = vsub.f32 %v414, %v556
        %v597 = vsub.f32 %v418, %v559
        %v598 = vsub.f32 %v420, %v559
        %v599 = vsub.f32 %v424, %v562
        %v600 = vsub.f32 %v426, %v562
        %v601 = vsub.f32 %v430, %v565
        %v602 = vsub.f32 %v432, %v565
        %v603 = vsub.f32 %v436, %v568
        %v604 = vsub.f32 %v438, %v568
        %v605 = vsub.f32 %v442, %v571
        %v606 = vsub.f32 %v444, %v571
        %v607 = vsub.f32 %v448, %v574
        %v608 = vsub.f32 %v450, %v574
        %v609 = vsub.f32 %v454, %v577
        %v610 = vsub.f32 %v456, %v577
        %v611 = vsub.f32 %v460, %v580
        %v612 = vsub.f32 %v462, %v580
        %613 = vst [vmem:[%s219] sm:$0xff] %v581
        %614 = vst [vmem:[%s219 + $0x8] sm:$0xff] %v582
        %615 = vst [vmem:[%s219 + $0x10] sm:$0xff] %v583
        %616 = vst [vmem:[%s219 + $0x18] sm:$0xff] %v584
        %617 = vst [vmem:[%s219 + $0x20] sm:$0xff] %v585
        %618 = vst [vmem:[%s219 + $0x28] sm:$0xff] %v586
        %619 = vst [vmem:[%s219 + $0x30] sm:$0xff] %v587
        %620 = vst [vmem:[%s219 + $0x38] sm:$0xff] %v588
        %621 = vst [vmem:[%s219 + $0x40] sm:$0xff] %v589
        %622 = vst [vmem:[%s219 + $0x48] sm:$0xff] %v590
        %623 = vst [vmem:[%s219 + $0x50] sm:$0xff] %v591
        %624 = vst [vmem:[%s219 + $0x58] sm:$0xff] %v592
        %625 = vst [vmem:[%s219 + $0x60] sm:$0xff] %v593
        %626 = vst [vmem:[%s219 + $0x68] sm:$0xff] %v594
        %627 = vst [vmem:[%s219 + $0x70] sm:$0xff] %v595
        %628 = vst [vmem:[%s219 + $0x78] sm:$0xff] %v596
        %629 = vst [vmem:[%s219 + $0x80] sm:$0xff] %v597
        %630 = vst [vmem:[%s219 + $0x88] sm:$0xff] %v598
        %631 = vst [vmem:[%s219 + $0x90] sm:$0xff] %v599
        %632 = vst [vmem:[%s219 + $0x98] sm:$0xff] %v600
        %633 = vst [vmem:[%s219 + $0xa0] sm:$0xff] %v601
        %634 = vst [vmem:[%s219 + $0xa8] sm:$0xff] %v602
        %635 = vst [vmem:[%s219 + $0xb0] sm:$0xff] %v603
        %636 = vst [vmem:[%s219 + $0xb8] sm:$0xff] %v604
        %637 = vst [vmem:[%s219 + $0xc0] sm:$0xff] %v605
        %638 = vst [vmem:[%s219 + $0xc8] sm:$0xff] %v606
        %639 = vst [vmem:[%s219 + $0xd0] sm:$0xff] %v607
        %640 = vst [vmem:[%s219 + $0xd8] sm:$0xff] %v608
        %641 = vst [vmem:[%s219 + $0xe0] sm:$0xff] %v609
        %642 = vst [vmem:[%s219 + $0xe8] sm:$0xff] %v610
        %643 = vst [vmem:[%s219 + $0xf0] sm:$0xff] %v611
        %644 = vst [vmem:[%s219 + $0xf8] sm:$0xff] %v612
        %v645 = vmul.f32 %v581, 1.442695
        %v646 = vpow.pop %v645
        %v647 = vmul.f32 %v582, 1.442695
        %v648 = vpow.pop %v647
        %v649 = vmul.f32 %v583, 1.442695
        %v650 = vpow.pop %v649
        %v651 = vmul.f32 %v584, 1.442695
        %v652 = vpow.pop %v651
        %v653 = vmul.f32 %v585, 1.442695
        %v654 = vpow.pop %v653
        %v655 = vmul.f32 %v586, 1.442695
        %v656 = vpow.pop %v655
        %v657 = vmul.f32 %v587, 1.442695
        %v658 = vpow.pop %v657
        %v659 = vmul.f32 %v588, 1.442695
        %v660 = vpow.pop %v659
        %v661 = vmul.f32 %v589, 1.442695
        %v662 = vpow.pop %v661
        %v663 = vmul.f32 %v590, 1.442695
        %v664 = vpow.pop %v663
        %v665 = vmul.f32 %v591, 1.442695
        %v666 = vpow.pop %v665
        %v667 = vmul.f32 %v592, 1.442695
        %v668 = vpow.pop %v667
        %v669 = vmul.f32 %v593, 1.442695
        %v670 = vpow.pop %v669
        %v671 = vmul.f32 %v594, 1.442695
        %v672 = vpow.pop %v671
        %v673 = vmul.f32 %v595, 1.442695
        %v674 = vpow.pop %v673
        %v675 = vmul.f32 %v596, 1.442695
        %v676 = vpow.pop %v675
        %v677 = vmul.f32 %v597, 1.442695
        %v678 = vpow.pop %v677
        %v679 = vmul.f32 %v598, 1.442695
        %v680 = vpow.pop %v679
        %v681 = vmul.f32 %v599, 1.442695
        %v682 = vpow.pop %v681
        %v683 = vmul.f32 %v600, 1.442695
        %v684 = vpow.pop %v683
        %v685 = vmul.f32 %v601, 1.442695
        %v686 = vpow.pop %v685
        %v687 = vmul.f32 %v602, 1.442695
        %v688 = vpow.pop %v687
        %v689 = vmul.f32 %v603, 1.442695
        %v690 = vpow.pop %v689
        %v691 = vmul.f32 %v604, 1.442695
        %v692 = vpow.pop %v691
        %v693 = vmul.f32 %v605, 1.442695
        %v694 = vpow.pop %v693
        %v695 = vmul.f32 %v606, 1.442695
        %v696 = vpow.pop %v695
        %v697 = vmul.f32 %v607, 1.442695
        %v698 = vpow.pop %v697
        %v699 = vmul.f32 %v608, 1.442695
        %v700 = vpow.pop %v699
        %v701 = vmul.f32 %v609, 1.442695
        %v702 = vpow.pop %v701
        %v703 = vmul.f32 %v610, 1.442695
        %v704 = vpow.pop %v703
        %v705 = vmul.f32 %v611, 1.442695
        %v706 = vpow.pop %v705
        %v707 = vmul.f32 %v612, 1.442695
        %v708 = vpow.pop %v707
        %v709 = vsel %vm501, %v646, 0.0
        %v710 = vsel %vm502, %v648, 0.0
        %v711 = vsel %vm503, %v650, 0.0
        %v712 = vsel %vm504, %v652, 0.0
        %v713 = vsel %vm505, %v654, 0.0
        %v714 = vsel %vm506, %v656, 0.0
        %v715 = vsel %vm507, %v658, 0.0
        %v716 = vsel %vm508, %v660, 0.0
        %v717 = vsel %vm509, %v662, 0.0
        %v718 = vsel %vm510, %v664, 0.0
        %v719 = vsel %vm511, %v666, 0.0
        %v720 = vsel %vm512, %v668, 0.0
        %v721 = vsel %vm513, %v670, 0.0
        %v722 = vsel %vm514, %v672, 0.0
        %v723 = vsel %vm515, %v674, 0.0
        %v724 = vsel %vm516, %v676, 0.0
        %v725 = vsel %vm517, %v678, 0.0
        %v726 = vsel %vm518, %v680, 0.0
        %v727 = vsel %vm519, %v682, 0.0
        %v728 = vsel %vm520, %v684, 0.0
        %v729 = vsel %vm521, %v686, 0.0
        %v730 = vsel %vm522, %v688, 0.0
        %v731 = vsel %vm523, %v690, 0.0
        %v732 = vsel %vm524, %v692, 0.0
        %v733 = vsel %vm525, %v694, 0.0
        %v734 = vsel %vm526, %v696, 0.0
        %v735 = vsel %vm527, %v698, 0.0
        %v736 = vsel %vm528, %v700, 0.0
        %v737 = vsel %vm529, %v702, 0.0
        %v738 = vsel %vm530, %v704, 0.0
        %v739 = vsel %vm531, %v706, 0.0
        %v740 = vsel %vm532, %v708, 0.0
        %v741 = vadd.f32 %v709, %v710
        %742 = vadd.xlane.f32.xlu0 %v741
        %v743 = vpop.xlane.xlu0 %742
        %v744 = vadd.f32 %v711, %v712
        %745 = vadd.xlane.f32.xlu0 %v744
        %v746 = vpop.xlane.xlu0 %745
        %v747 = vadd.f32 %v713, %v714
        %748 = vadd.xlane.f32.xlu0 %v747
        %v749 = vpop.xlane.xlu0 %748
        %v750 = vadd.f32 %v715, %v716
        %751 = vadd.xlane.f32.xlu0 %v750
        %v752 = vpop.xlane.xlu0 %751
        %v753 = vadd.f32 %v717, %v718
        %754 = vadd.xlane.f32.xlu0 %v753
        %v755 = vpop.xlane.xlu0 %754
        %v756 = vadd.f32 %v719, %v720
        %757 = vadd.xlane.f32.xlu0 %v756
        %v758 = vpop.xlane.xlu0 %757
        %v759 = vadd.f32 %v721, %v722
        %760 = vadd.xlane.f32.xlu0 %v759
        %v761 = vpop.xlane.xlu0 %760
        %v762 = vadd.f32 %v723, %v724
        %763 = vadd.xlane.f32.xlu0 %v762
        %v764 = vpop.xlane.xlu0 %763
        %v765 = vadd.f32 %v725, %v726
        %766 = vadd.xlane.f32.xlu0 %v765
        %v767 = vpop.xlane.xlu0 %766
        %v768 = vadd.f32 %v727, %v728
        %769 = vadd.xlane.f32.xlu0 %v768
        %v770 = vpop.xlane.xlu0 %769
        %v771 = vadd.f32 %v729, %v730
        %772 = vadd.xlane.f32.xlu0 %v771
        %v773 = vpop.xlane.xlu0 %772
        %v774 = vadd.f32 %v731, %v732
        %775 = vadd.xlane.f32.xlu0 %v774
        %v776 = vpop.xlane.xlu0 %775
        %v777 = vadd.f32 %v733, %v734
        %778 = vadd.xlane.f32.xlu0 %v777
        %v779 = vpop.xlane.xlu0 %778
        %v780 = vadd.f32 %v735, %v736
        %781 = vadd.xlane.f32.xlu0 %v780
        %v782 = vpop.xlane.xlu0 %781
        %v783 = vadd.f32 %v737, %v738
        %784 = vadd.xlane.f32.xlu0 %v783
        %v785 = vpop.xlane.xlu0 %784
        %v786 = vadd.f32 %v739, %v740
        %787 = vadd.xlane.f32.xlu0 %v786
        %v788 = vpop.xlane.xlu0 %787
        %v789 = vlog2.pop %v743
        %v790 = vmul.f32 %v789, 0.6931472
        %v791 = vlog2.pop %v746
        %v792 = vmul.f32 %v791, 0.6931472
        %v793 = vlog2.pop %v749
        %v794 = vmul.f32 %v793, 0.6931472
        %v795 = vlog2.pop %v752
        %v796 = vmul.f32 %v795, 0.6931472
        %v797 = vlog2.pop %v755
        %v798 = vmul.f32 %v797, 0.6931472
        %v799 = vlog2.pop %v758
        %v800 = vmul.f32 %v799, 0.6931472
        %v801 = vlog2.pop %v761
        %v802 = vmul.f32 %v801, 0.6931472
        %v803 = vlog2.pop %v764
        %v804 = vmul.f32 %v803, 0.6931472
        %v805 = vlog2.pop %v767
        %v806 = vmul.f32 %v805, 0.6931472
        %v807 = vlog2.pop %v770
        %v808 = vmul.f32 %v807, 0.6931472
        %v809 = vlog2.pop %v773
        %v810 = vmul.f32 %v809, 0.6931472
        %v811 = vlog2.pop %v776
        %v812 = vmul.f32 %v811, 0.6931472
        %v813 = vlog2.pop %v779
        %v814 = vmul.f32 %v813, 0.6931472
        %v815 = vlog2.pop %v782
        %v816 = vmul.f32 %v815, 0.6931472
        %v817 = vlog2.pop %v785
        %v818 = vmul.f32 %v817, 0.6931472
        %v819 = vlog2.pop %v788
        %v820 = vmul.f32 %v819, 0.6931472
        %v821 = vld [vmem:[%s238] sm:$0xff]
        %v822 = vld [vmem:[%s238 + $0x8] sm:$0xff]
        %v823 = vld [vmem:[%s238 + $0x10] sm:$0xff]
        %v824 = vld [vmem:[%s238 + $0x18] sm:$0xff]
        %v825 = vld [vmem:[%s238 + $0x20] sm:$0xff]
        %v826 = vld [vmem:[%s238 + $0x28] sm:$0xff]
        %v827 = vld [vmem:[%s238 + $0x30] sm:$0xff]
        %v828 = vld [vmem:[%s238 + $0x38] sm:$0xff]
        %v829 = vld [vmem:[%s238 + $0x40] sm:$0xff]
        %v830 = vld [vmem:[%s238 + $0x48] sm:$0xff]
        %v831 = vld [vmem:[%s238 + $0x50] sm:$0xff]
        %v832 = vld [vmem:[%s238 + $0x58] sm:$0xff]
        %v833 = vld [vmem:[%s238 + $0x60] sm:$0xff]
        %v834 = vld [vmem:[%s238 + $0x68] sm:$0xff]
        %v835 = vld [vmem:[%s238 + $0x70] sm:$0xff]
        %v836 = vld [vmem:[%s238 + $0x78] sm:$0xff]
        %v837 = vld [vmem:[%s2] sm:$0x3]
        %838 = vset.pattern.permute.xlu0 0
        %839 = vperm.xlu0 %838, %v821
        %v840 = vpop.permute.xlu0 %839
        %841 = vset.pattern.permute.xlu0 0
        %842 = vperm.xlu0 %841, %v822
        %v843 = vpop.permute.xlu0 %842
        %844 = vset.pattern.permute.xlu0 0
        %845 = vperm.xlu0 %844, %v823
        %v846 = vpop.permute.xlu0 %845
        %847 = vset.pattern.permute.xlu0 0
        %848 = vperm.xlu0 %847, %v824
        %v849 = vpop.permute.xlu0 %848
        %850 = vset.pattern.permute.xlu0 0
        %851 = vperm.xlu0 %850, %v825
        %v852 = vpop.permute.xlu0 %851
        %853 = vset.pattern.permute.xlu0 0
        %854 = vperm.xlu0 %853, %v826
        %v855 = vpop.permute.xlu0 %854
        %856 = vset.pattern.permute.xlu0 0
        %857 = vperm.xlu0 %856, %v827
        %v858 = vpop.permute.xlu0 %857
        %859 = vset.pattern.permute.xlu0 0
        %860 = vperm.xlu0 %859, %v828
        %v861 = vpop.permute.xlu0 %860
        %862 = vset.pattern.permute.xlu0 0
        %863 = vperm.xlu0 %862, %v829
        %v864 = vpop.permute.xlu0 %863
        %865 = vset.pattern.permute.xlu0 0
        %866 = vperm.xlu0 %865, %v830
        %v867 = vpop.permute.xlu0 %866
        %868 = vset.pattern.permute.xlu0 0
        %869 = vperm.xlu0 %868, %v831
        %v870 = vpop.permute.xlu0 %869
        %871 = vset.pattern.permute.xlu0 0
        %872 = vperm.xlu0 %871, %v832
        %v873 = vpop.permute.xlu0 %872
        %874 = vset.pattern.permute.xlu0 0
        %875 = vperm.xlu0 %874, %v833
        %v876 = vpop.permute.xlu0 %875
        %877 = vset.pattern.permute.xlu0 0
        %878 = vperm.xlu0 %877, %v834
        %v879 = vpop.permute.xlu0 %878
        %880 = vset.pattern.permute.xlu0 0
        %881 = vperm.xlu0 %880, %v835
        %v882 = vpop.permute.xlu0 %881
        %883 = vset.pattern.permute.xlu0 0
        %884 = vperm.xlu0 %883, %v836
        %v885 = vpop.permute.xlu0 %884
        %v886 = vlaneseq
        %v887 = vshrl.u32 %v886, 7
        %v888 = vsub.s32 0, %v887
        %v889 = vrot.slane %v837, %v888
        %v890 = vlaneseq
        %v891 = vshrl.u32 %v890, 7
        %v892 = vsub.s32 1, %v891
        %v893 = vrot.slane %v837, %v892
        %vm894 = vcmp.eq.s32.totalorder %v840, %v889
        %vm895 = vcmp.eq.s32.totalorder %v840, %v893
        %vm896 = vcmp.eq.s32.totalorder %v843, %v889
        %vm897 = vcmp.eq.s32.totalorder %v843, %v893
        %vm898 = vcmp.eq.s32.totalorder %v846, %v889
        %vm899 = vcmp.eq.s32.totalorder %v846, %v893
        %vm900 = vcmp.eq.s32.totalorder %v849, %v889
        %vm901 = vcmp.eq.s32.totalorder %v849, %v893
        %vm902 = vcmp.eq.s32.totalorder %v852, %v889
        %vm903 = vcmp.eq.s32.totalorder %v852, %v893
        %vm904 = vcmp.eq.s32.totalorder %v855, %v889
        %vm905 = vcmp.eq.s32.totalorder %v855, %v893
        %vm906 = vcmp.eq.s32.totalorder %v858, %v889
        %vm907 = vcmp.eq.s32.totalorder %v858, %v893
        %vm908 = vcmp.eq.s32.totalorder %v861, %v889
        %vm909 = vcmp.eq.s32.totalorder %v861, %v893
        %vm910 = vcmp.eq.s32.totalorder %v864, %v889
        %vm911 = vcmp.eq.s32.totalorder %v864, %v893
        %vm912 = vcmp.eq.s32.totalorder %v867, %v889
        %vm913 = vcmp.eq.s32.totalorder %v867, %v893
        %vm914 = vcmp.eq.s32.totalorder %v870, %v889
        %vm915 = vcmp.eq.s32.totalorder %v870, %v893
        %vm916 = vcmp.eq.s32.totalorder %v873, %v889
        %vm917 = vcmp.eq.s32.totalorder %v873, %v893
        %vm918 = vcmp.eq.s32.totalorder %v876, %v889
        %vm919 = vcmp.eq.s32.totalorder %v876, %v893
        %vm920 = vcmp.eq.s32.totalorder %v879, %v889
        %vm921 = vcmp.eq.s32.totalorder %v879, %v893
        %vm922 = vcmp.eq.s32.totalorder %v882, %v889
        %vm923 = vcmp.eq.s32.totalorder %v882, %v893
        %vm924 = vcmp.eq.s32.totalorder %v885, %v889
        %vm925 = vcmp.eq.s32.totalorder %v885, %v893
        %vm926 = vmand %vm894, %vm501
        %vm927 = vmand %vm895, %vm502
        %vm928 = vmand %vm896, %vm503
        %vm929 = vmand %vm897, %vm504
        %vm930 = vmand %vm898, %vm505
        %vm931 = vmand %vm899, %vm506
        %vm932 = vmand %vm900, %vm507
        %vm933 = vmand %vm901, %vm508
        %vm934 = vmand %vm902, %vm509
        %vm935 = vmand %vm903, %vm510
        %vm936 = vmand %vm904, %vm511
        %vm937 = vmand %vm905, %vm512
        %vm938 = vmand %vm906, %vm513
        %vm939 = vmand %vm907, %vm514
        %vm940 = vmand %vm908, %vm515
        %vm941 = vmand %vm909, %vm516
        %vm942 = vmand %vm910, %vm517
        %vm943 = vmand %vm911, %vm518
        %vm944 = vmand %vm912, %vm519
        %vm945 = vmand %vm913, %vm520
        %vm946 = vmand %vm914, %vm521
        %vm947 = vmand %vm915, %vm522
        %vm948 = vmand %vm916, %vm523
        %vm949 = vmand %vm917, %vm524
        %vm950 = vmand %vm918, %vm525
        %vm951 = vmand %vm919, %vm526
        %vm952 = vmand %vm920, %vm527
        %vm953 = vmand %vm921, %vm528
        %vm954 = vmand %vm922, %vm529
        %vm955 = vmand %vm923, %vm530
        %vm956 = vmand %vm924, %vm531
        %vm957 = vmand %vm925, %vm532
        %v958 = vsel %vm926, 1, 0
        %v959 = vsel %vm927, 1, 0
        %v960 = vsel %vm928, 1, 0
        %v961 = vsel %vm929, 1, 0
        %v962 = vsel %vm930, 1, 0
        %v963 = vsel %vm931, 1, 0
        %v964 = vsel %vm932, 1, 0
        %v965 = vsel %vm933, 1, 0
        %v966 = vsel %vm934, 1, 0
        %v967 = vsel %vm935, 1, 0
        %v968 = vsel %vm936, 1, 0
        %v969 = vsel %vm937, 1, 0
        %v970 = vsel %vm938, 1, 0
        %v971 = vsel %vm939, 1, 0
        %v972 = vsel %vm940, 1, 0
        %v973 = vsel %vm941, 1, 0
        %v974 = vsel %vm942, 1, 0
        %v975 = vsel %vm943, 1, 0
        %v976 = vsel %vm944, 1, 0
        %v977 = vsel %vm945, 1, 0
        %v978 = vsel %vm946, 1, 0
        %v979 = vsel %vm947, 1, 0
        %v980 = vsel %vm948, 1, 0
        %v981 = vsel %vm949, 1, 0
        %v982 = vsel %vm950, 1, 0
        %v983 = vsel %vm951, 1, 0
        %v984 = vsel %vm952, 1, 0
        %v985 = vsel %vm953, 1, 0
        %v986 = vsel %vm954, 1, 0
        %v987 = vsel %vm955, 1, 0
        %v988 = vsel %vm956, 1, 0
        %v989 = vsel %vm957, 1, 0
        %v990 = vcvt.s32.f32 %v958
        %v991 = vcvt.s32.f32 %v959
        %v992 = vcvt.s32.f32 %v960
        %v993 = vcvt.s32.f32 %v961
        %v994 = vcvt.s32.f32 %v962
        %v995 = vcvt.s32.f32 %v963
        %v996 = vcvt.s32.f32 %v964
        %v997 = vcvt.s32.f32 %v965
        %v998 = vcvt.s32.f32 %v966
        %v999 = vcvt.s32.f32 %v967
        %v1000 = vcvt.s32.f32 %v968
        %v1001 = vcvt.s32.f32 %v969
        %v1002 = vcvt.s32.f32 %v970
        %v1003 = vcvt.s32.f32 %v971
        %v1004 = vcvt.s32.f32 %v972
        %v1005 = vcvt.s32.f32 %v973
        %v1006 = vcvt.s32.f32 %v974
        %v1007 = vcvt.s32.f32 %v975
        %v1008 = vcvt.s32.f32 %v976
        %v1009 = vcvt.s32.f32 %v977
        %v1010 = vcvt.s32.f32 %v978
        %v1011 = vcvt.s32.f32 %v979
        %v1012 = vcvt.s32.f32 %v980
        %v1013 = vcvt.s32.f32 %v981
        %v1014 = vcvt.s32.f32 %v982
        %v1015 = vcvt.s32.f32 %v983
        %v1016 = vcvt.s32.f32 %v984
        %v1017 = vcvt.s32.f32 %v985
        %v1018 = vcvt.s32.f32 %v986
        %v1019 = vcvt.s32.f32 %v987
        %v1020 = vcvt.s32.f32 %v988
        %v1021 = vcvt.s32.f32 %v989
        %v1022 = vadd.f32 %v990, %v991
        %1023 = vadd.xlane.f32.xlu0 %v1022
        %v1024 = vpop.xlane.xlu0 %1023
        %v1025 = vadd.f32 %v992, %v993
        %1026 = vadd.xlane.f32.xlu0 %v1025
        %v1027 = vpop.xlane.xlu0 %1026
        %v1028 = vadd.f32 %v994, %v995
        %1029 = vadd.xlane.f32.xlu0 %v1028
        %v1030 = vpop.xlane.xlu0 %1029
        %v1031 = vadd.f32 %v996, %v997
        %1032 = vadd.xlane.f32.xlu0 %v1031
        %v1033 = vpop.xlane.xlu0 %1032
        %v1034 = vadd.f32 %v998, %v999
        %1035 = vadd.xlane.f32.xlu0 %v1034
        %v1036 = vpop.xlane.xlu0 %1035
        %v1037 = vadd.f32 %v1000, %v1001
        %1038 = vadd.xlane.f32.xlu0 %v1037
        %v1039 = vpop.xlane.xlu0 %1038
        %v1040 = vadd.f32 %v1002, %v1003
        %1041 = vadd.xlane.f32.xlu0 %v1040
        %v1042 = vpop.xlane.xlu0 %1041
        %v1043 = vadd.f32 %v1004, %v1005
        %1044 = vadd.xlane.f32.xlu0 %v1043
        %v1045 = vpop.xlane.xlu0 %1044
        %v1046 = vadd.f32 %v1006, %v1007
        %1047 = vadd.xlane.f32.xlu0 %v1046
        %v1048 = vpop.xlane.xlu0 %1047
        %v1049 = vadd.f32 %v1008, %v1009
        %1050 = vadd.xlane.f32.xlu0 %v1049
        %v1051 = vpop.xlane.xlu0 %1050
        %v1052 = vadd.f32 %v1010, %v1011
        %1053 = vadd.xlane.f32.xlu0 %v1052
        %v1054 = vpop.xlane.xlu0 %1053
        %v1055 = vadd.f32 %v1012, %v1013
        %1056 = vadd.xlane.f32.xlu0 %v1055
        %v1057 = vpop.xlane.xlu0 %1056
        %v1058 = vadd.f32 %v1014, %v1015
        %1059 = vadd.xlane.f32.xlu0 %v1058
        %v1060 = vpop.xlane.xlu0 %1059
        %v1061 = vadd.f32 %v1016, %v1017
        %1062 = vadd.xlane.f32.xlu0 %v1061
        %v1063 = vpop.xlane.xlu0 %1062
        %v1064 = vadd.f32 %v1018, %v1019
        %1065 = vadd.xlane.f32.xlu0 %v1064
        %v1066 = vpop.xlane.xlu0 %1065
        %v1067 = vadd.f32 %v1020, %v1021
        %1068 = vadd.xlane.f32.xlu0 %v1067
        %v1069 = vpop.xlane.xlu0 %1068
        %v1070 = vsel %vm926, %v581, 0.0
        %v1071 = vsel %vm927, %v582, 0.0
        %v1072 = vsel %vm928, %v583, 0.0
        %v1073 = vsel %vm929, %v584, 0.0
        %v1074 = vsel %vm930, %v585, 0.0
        %v1075 = vsel %vm931, %v586, 0.0
        %v1076 = vsel %vm932, %v587, 0.0
        %v1077 = vsel %vm933, %v588, 0.0
        %v1078 = vsel %vm934, %v589, 0.0
        %v1079 = vsel %vm935, %v590, 0.0
        %v1080 = vsel %vm936, %v591, 0.0
        %v1081 = vsel %vm937, %v592, 0.0
        %v1082 = vsel %vm938, %v593, 0.0
        %v1083 = vsel %vm939, %v594, 0.0
        %v1084 = vsel %vm940, %v595, 0.0
        %v1085 = vsel %vm941, %v596, 0.0
        %v1086 = vsel %vm942, %v597, 0.0
        %v1087 = vsel %vm943, %v598, 0.0
        %v1088 = vsel %vm944, %v599, 0.0
        %v1089 = vsel %vm945, %v600, 0.0
        %v1090 = vsel %vm946, %v601, 0.0
        %v1091 = vsel %vm947, %v602, 0.0
        %v1092 = vsel %vm948, %v603, 0.0
        %v1093 = vsel %vm949, %v604, 0.0
        %v1094 = vsel %vm950, %v605, 0.0
        %v1095 = vsel %vm951, %v606, 0.0
        %v1096 = vsel %vm952, %v607, 0.0
        %v1097 = vsel %vm953, %v608, 0.0
        %v1098 = vsel %vm954, %v609, 0.0
        %v1099 = vsel %vm955, %v610, 0.0
        %v1100 = vsel %vm956, %v611, 0.0
        %v1101 = vsel %vm957, %v612, 0.0
        %v1102 = vadd.f32 %v1070, %v1071
        %1103 = vadd.xlane.f32.xlu0 %v1102
        %v1104 = vpop.xlane.xlu0 %1103
        %v1105 = vadd.f32 %v1072, %v1073
        %1106 = vadd.xlane.f32.xlu0 %v1105
        %v1107 = vpop.xlane.xlu0 %1106
        %v1108 = vadd.f32 %v1074, %v1075
        %1109 = vadd.xlane.f32.xlu0 %v1108
        %v1110 = vpop.xlane.xlu0 %1109
        %v1111 = vadd.f32 %v1076, %v1077
        %1112 = vadd.xlane.f32.xlu0 %v1111
        %v1113 = vpop.xlane.xlu0 %1112
        %v1114 = vadd.f32 %v1078, %v1079
        %1115 = vadd.xlane.f32.xlu0 %v1114
        %v1116 = vpop.xlane.xlu0 %1115
        %v1117 = vadd.f32 %v1080, %v1081
        %1118 = vadd.xlane.f32.xlu0 %v1117
        %v1119 = vpop.xlane.xlu0 %1118
        %v1120 = vadd.f32 %v1082, %v1083
        %1121 = vadd.xlane.f32.xlu0 %v1120
        %v1122 = vpop.xlane.xlu0 %1121
        %v1123 = vadd.f32 %v1084, %v1085
        %1124 = vadd.xlane.f32.xlu0 %v1123
        %v1125 = vpop.xlane.xlu0 %1124
        %v1126 = vadd.f32 %v1086, %v1087
        %1127 = vadd.xlane.f32.xlu0 %v1126
        %v1128 = vpop.xlane.xlu0 %1127
        %v1129 = vadd.f32 %v1088, %v1089
        %1130 = vadd.xlane.f32.xlu0 %v1129
        %v1131 = vpop.xlane.xlu0 %1130
        %v1132 = vadd.f32 %v1090, %v1091
        %1133 = vadd.xlane.f32.xlu0 %v1132
        %v1134 = vpop.xlane.xlu0 %1133
        %v1135 = vadd.f32 %v1092, %v1093
        %1136 = vadd.xlane.f32.xlu0 %v1135
        %v1137 = vpop.xlane.xlu0 %1136
        %v1138 = vadd.f32 %v1094, %v1095
        %1139 = vadd.xlane.f32.xlu0 %v1138
        %v1140 = vpop.xlane.xlu0 %1139
        %v1141 = vadd.f32 %v1096, %v1097
        %1142 = vadd.xlane.f32.xlu0 %v1141
        %v1143 = vpop.xlane.xlu0 %1142
        %v1144 = vadd.f32 %v1098, %v1099
        %1145 = vadd.xlane.f32.xlu0 %v1144
        %v1146 = vpop.xlane.xlu0 %1145
        %v1147 = vadd.f32 %v1100, %v1101
        %1148 = vadd.xlane.f32.xlu0 %v1147
        %v1149 = vpop.xlane.xlu0 %1148
        %vm1150 = vcmp.gt.f32.partialorder %v1024, 0.0
        %vm1151 = vcmp.gt.f32.partialorder %v1027, 0.0
        %vm1152 = vcmp.gt.f32.partialorder %v1030, 0.0
        %vm1153 = vcmp.gt.f32.partialorder %v1033, 0.0
        %vm1154 = vcmp.gt.f32.partialorder %v1036, 0.0
        %vm1155 = vcmp.gt.f32.partialorder %v1039, 0.0
        %vm1156 = vcmp.gt.f32.partialorder %v1042, 0.0
        %vm1157 = vcmp.gt.f32.partialorder %v1045, 0.0
        %vm1158 = vcmp.gt.f32.partialorder %v1048, 0.0
        %vm1159 = vcmp.gt.f32.partialorder %v1051, 0.0
        %vm1160 = vcmp.gt.f32.partialorder %v1054, 0.0
        %vm1161 = vcmp.gt.f32.partialorder %v1057, 0.0
        %vm1162 = vcmp.gt.f32.partialorder %v1060, 0.0
        %vm1163 = vcmp.gt.f32.partialorder %v1063, 0.0
        %vm1164 = vcmp.gt.f32.partialorder %v1066, 0.0
        %vm1165 = vcmp.gt.f32.partialorder %v1069, 0.0
        %v1166 = vmul.f32 %v1024, %v790
        %v1167 = vmul.f32 %v1027, %v792
        %v1168 = vmul.f32 %v1030, %v794
        %v1169 = vmul.f32 %v1033, %v796
        %v1170 = vmul.f32 %v1036, %v798
        %v1171 = vmul.f32 %v1039, %v800
        %v1172 = vmul.f32 %v1042, %v802
        %v1173 = vmul.f32 %v1045, %v804
        %v1174 = vmul.f32 %v1048, %v806
        %v1175 = vmul.f32 %v1051, %v808
        %v1176 = vmul.f32 %v1054, %v810
        %v1177 = vmul.f32 %v1057, %v812
        %v1178 = vmul.f32 %v1060, %v814
        %v1179 = vmul.f32 %v1063, %v816
        %v1180 = vmul.f32 %v1066, %v818
        %v1181 = vmul.f32 %v1069, %v820
        %v1182 = vsub.f32 %v1104, %v1166
        %v1183 = vsub.f32 %v1107, %v1167
        %v1184 = vsub.f32 %v1110, %v1168
        %v1185 = vsub.f32 %v1113, %v1169
        %v1186 = vsub.f32 %v1116, %v1170
        %v1187 = vsub.f32 %v1119, %v1171
        %v1188 = vsub.f32 %v1122, %v1172
        %v1189 = vsub.f32 %v1125, %v1173
        %v1190 = vsub.f32 %v1128, %v1174
        %v1191 = vsub.f32 %v1131, %v1175
        %v1192 = vsub.f32 %v1134, %v1176
        %v1193 = vsub.f32 %v1137, %v1177
        %v1194 = vsub.f32 %v1140, %v1178
        %v1195 = vsub.f32 %v1143, %v1179
        %v1196 = vsub.f32 %v1146, %v1180
        %v1197 = vsub.f32 %v1149, %v1181
        %v1198 = vsel %vm1150, %v1024, 1.0
        %v1199 = vsel %vm1151, %v1027, 1.0
        %v1200 = vsel %vm1152, %v1030, 1.0
        %v1201 = vsel %vm1153, %v1033, 1.0
        %v1202 = vsel %vm1154, %v1036, 1.0
        %v1203 = vsel %vm1155, %v1039, 1.0
        %v1204 = vsel %vm1156, %v1042, 1.0
        %v1205 = vsel %vm1157, %v1045, 1.0
        %v1206 = vsel %vm1158, %v1048, 1.0
        %v1207 = vsel %vm1159, %v1051, 1.0
        %v1208 = vsel %vm1160, %v1054, 1.0
        %v1209 = vsel %vm1161, %v1057, 1.0
        %v1210 = vsel %vm1162, %v1060, 1.0
        %v1211 = vsel %vm1163, %v1063, 1.0
        %v1212 = vsel %vm1164, %v1066, 1.0
        %v1213 = vsel %vm1165, %v1069, 1.0
        %v1214 = vrcp.pop %v1198
        %v1215 = vmul.f32 %v1182, %v1214
        %v1216 = vrcp.pop %v1199
        %v1217 = vmul.f32 %v1183, %v1216
        %v1218 = vrcp.pop %v1200
        %v1219 = vmul.f32 %v1184, %v1218
        %v1220 = vrcp.pop %v1201
        %v1221 = vmul.f32 %v1185, %v1220
        %v1222 = vrcp.pop %v1202
        %v1223 = vmul.f32 %v1186, %v1222
        %v1224 = vrcp.pop %v1203
        %v1225 = vmul.f32 %v1187, %v1224
        %v1226 = vrcp.pop %v1204
        %v1227 = vmul.f32 %v1188, %v1226
        %v1228 = vrcp.pop %v1205
        %v1229 = vmul.f32 %v1189, %v1228
        %v1230 = vrcp.pop %v1206
        %v1231 = vmul.f32 %v1190, %v1230
        %v1232 = vrcp.pop %v1207
        %v1233 = vmul.f32 %v1191, %v1232
        %v1234 = vrcp.pop %v1208
        %v1235 = vmul.f32 %v1192, %v1234
        %v1236 = vrcp.pop %v1209
        %v1237 = vmul.f32 %v1193, %v1236
        %v1238 = vrcp.pop %v1210
        %v1239 = vmul.f32 %v1194, %v1238
        %v1240 = vrcp.pop %v1211
        %v1241 = vmul.f32 %v1195, %v1240
        %v1242 = vrcp.pop %v1212
        %v1243 = vmul.f32 %v1196, %v1242
        %v1244 = vrcp.pop %v1213
        %v1245 = vmul.f32 %v1197, %v1244
        %v1246 = vmul.f32 %v1215, -1.0
        %v1247 = vmul.f32 %v1217, -1.0
        %v1248 = vmul.f32 %v1219, -1.0
        %v1249 = vmul.f32 %v1221, -1.0
        %v1250 = vmul.f32 %v1223, -1.0
        %v1251 = vmul.f32 %v1225, -1.0
        %v1252 = vmul.f32 %v1227, -1.0
        %v1253 = vmul.f32 %v1229, -1.0
        %v1254 = vmul.f32 %v1231, -1.0
        %v1255 = vmul.f32 %v1233, -1.0
        %v1256 = vmul.f32 %v1235, -1.0
        %v1257 = vmul.f32 %v1237, -1.0
        %v1258 = vmul.f32 %v1239, -1.0
        %v1259 = vmul.f32 %v1241, -1.0
        %v1260 = vmul.f32 %v1243, -1.0
        %v1261 = vmul.f32 %v1245, -1.0
        %v1262 = vsel %vm1150, %v1246, 0.0
        %v1263 = vsel %vm1151, %v1247, 0.0
        %v1264 = vsel %vm1152, %v1248, 0.0
        %v1265 = vsel %vm1153, %v1249, 0.0
        %v1266 = vsel %vm1154, %v1250, 0.0
        %v1267 = vsel %vm1155, %v1251, 0.0
        %v1268 = vsel %vm1156, %v1252, 0.0
        %v1269 = vsel %vm1157, %v1253, 0.0
        %v1270 = vsel %vm1158, %v1254, 0.0
        %v1271 = vsel %vm1159, %v1255, 0.0
        %v1272 = vsel %vm1160, %v1256, 0.0
        %v1273 = vsel %vm1161, %v1257, 0.0
        %v1274 = vsel %vm1162, %v1258, 0.0
        %v1275 = vsel %vm1163, %v1259, 0.0
        %v1276 = vsel %vm1164, %v1260, 0.0
        %v1277 = vsel %vm1165, %v1261, 0.0
        %vm1278 = vcmask 7168
        %1279 = vst.msk [vmem:[%s245] sm:$0xff] %vm1278, %v1262
        %1280 = vst.msk [vmem:[%s245 + $0x8] sm:$0xff] %vm1278, %v1263
        %1281 = vst.msk [vmem:[%s245 + $0x10] sm:$0xff] %vm1278, %v1264
        %1282 = vst.msk [vmem:[%s245 + $0x18] sm:$0xff] %vm1278, %v1265
        %1283 = vst.msk [vmem:[%s245 + $0x20] sm:$0xff] %vm1278, %v1266
        %1284 = vst.msk [vmem:[%s245 + $0x28] sm:$0xff] %vm1278, %v1267
        %1285 = vst.msk [vmem:[%s245 + $0x30] sm:$0xff] %vm1278, %v1268
        %1286 = vst.msk [vmem:[%s245 + $0x38] sm:$0xff] %vm1278, %v1269
        %1287 = vst.msk [vmem:[%s245 + $0x40] sm:$0xff] %vm1278, %v1270
        %1288 = vst.msk [vmem:[%s245 + $0x48] sm:$0xff] %vm1278, %v1271
        %1289 = vst.msk [vmem:[%s245 + $0x50] sm:$0xff] %vm1278, %v1272
        %1290 = vst.msk [vmem:[%s245 + $0x58] sm:$0xff] %vm1278, %v1273
        %1291 = vst.msk [vmem:[%s245 + $0x60] sm:$0xff] %vm1278, %v1274
        %1292 = vst.msk [vmem:[%s245 + $0x68] sm:$0xff] %vm1278, %v1275
        %1293 = vst.msk [vmem:[%s245 + $0x70] sm:$0xff] %vm1278, %v1276
        %1294 = vst.msk [vmem:[%s245 + $0x78] sm:$0xff] %vm1278, %v1277
        %v1295 = vsel %vm1150, 1, 0
        %v1296 = vsel %vm1151, 1, 0
        %v1297 = vsel %vm1152, 1, 0
        %v1298 = vsel %vm1153, 1, 0
        %v1299 = vsel %vm1154, 1, 0
        %v1300 = vsel %vm1155, 1, 0
        %v1301 = vsel %vm1156, 1, 0
        %v1302 = vsel %vm1157, 1, 0
        %v1303 = vsel %vm1158, 1, 0
        %v1304 = vsel %vm1159, 1, 0
        %v1305 = vsel %vm1160, 1, 0
        %v1306 = vsel %vm1161, 1, 0
        %v1307 = vsel %vm1162, 1, 0
        %v1308 = vsel %vm1163, 1, 0
        %v1309 = vsel %vm1164, 1, 0
        %v1310 = vsel %vm1165, 1, 0
        %v1311 = vcvt.s32.f32 %v1295
        %v1312 = vcvt.s32.f32 %v1296
        %v1313 = vcvt.s32.f32 %v1297
        %v1314 = vcvt.s32.f32 %v1298
        %v1315 = vcvt.s32.f32 %v1299
        %v1316 = vcvt.s32.f32 %v1300
        %v1317 = vcvt.s32.f32 %v1301
        %v1318 = vcvt.s32.f32 %v1302
        %v1319 = vcvt.s32.f32 %v1303
        %v1320 = vcvt.s32.f32 %v1304
        %v1321 = vcvt.s32.f32 %v1305
        %v1322 = vcvt.s32.f32 %v1306
        %v1323 = vcvt.s32.f32 %v1307
        %v1324 = vcvt.s32.f32 %v1308
        %v1325 = vcvt.s32.f32 %v1309
        %v1326 = vcvt.s32.f32 %v1310
        %1327 = vst.msk [vmem:[%s251] sm:$0xff] %vm1278, %v1311
        %1328 = vst.msk [vmem:[%s251 + $0x8] sm:$0xff] %vm1278, %v1312
        %1329 = vst.msk [vmem:[%s251 + $0x10] sm:$0xff] %vm1278, %v1313
        %1330 = vst.msk [vmem:[%s251 + $0x18] sm:$0xff] %vm1278, %v1314
        %1331 = vst.msk [vmem:[%s251 + $0x20] sm:$0xff] %vm1278, %v1315
        %1332 = vst.msk [vmem:[%s251 + $0x28] sm:$0xff] %vm1278, %v1316
        %1333 = vst.msk [vmem:[%s251 + $0x30] sm:$0xff] %vm1278, %v1317
        %1334 = vst.msk [vmem:[%s251 + $0x38] sm:$0xff] %vm1278, %v1318
        %1335 = vst.msk [vmem:[%s251 + $0x40] sm:$0xff] %vm1278, %v1319
        %1336 = vst.msk [vmem:[%s251 + $0x48] sm:$0xff] %vm1278, %v1320
        %1337 = vst.msk [vmem:[%s251 + $0x50] sm:$0xff] %vm1278, %v1321
        %1338 = vst.msk [vmem:[%s251 + $0x58] sm:$0xff] %vm1278, %v1322
        %1339 = vst.msk [vmem:[%s251 + $0x60] sm:$0xff] %vm1278, %v1323
        %1340 = vst.msk [vmem:[%s251 + $0x68] sm:$0xff] %vm1278, %v1324
        %1341 = vst.msk [vmem:[%s251 + $0x70] sm:$0xff] %vm1278, %v1325
        %1342 = vst.msk [vmem:[%s251 + $0x78] sm:$0xff] %vm1278, %v1326
        %s1343 = sand.u32 %s96, 1
        %s1344 = scalar_lea.sflag [#allocation3], %s1343
        %s1345 = sand.u32 %s96, 1
        %s1346 = smul.addr %s1345, 256
        %s1347 = scalar_lea.vmem [#allocation2], %s1346
        %s1348 = smul.u32 16, %s20
        %p1349 = scmp.lt.s32.totalorder %s1348, 31
        %s1350 = scalar_select %p1349, %s1348, 31
        %s1351 = smul.addr %s1350, 8
        %s1352 = scalar_lea.vmem %s4, %s1351
        %s1353 = smul.u32 16, %s20
        %p1354 = scmp.lt.s32.totalorder %s1353, 31
        %s1355 = scalar_select %p1354, %s1353, 31
        %s1356 = smul.addr %s1355, 8
        %s1357 = scalar_lea.vmem %s5, %s1356
        // Predicated region
        $region33: #{tpu_custom_call.1} parent=31 // pred_check
          %p1358 = pneg %p106
        $region34: #{tpu_custom_call.1} parent=31 // pred_check_branch
          %1360 = sbr.rel (%p1358) target = $region36
        $region35: #{tpu_custom_call.1} parent=31 // pred_region
          %s1361 = smul.u32 16, %s20
          %s1363 = ssub.s32 4096, 4096
          %1364 = vsyncadd %s1344, %s1363
          %s1365 = smul.addr %s1361, 2
          %s1366 = smul.addr %s1365, 128
          %s1367 = scalar_lea.hbm %s3, %s1366
          %s1368 = sshll.u32 %s1347, 4
          %s1369 = int_to_ptr.vmem [resolvable:$true] %s1368
          %1374 = dma.vmem_to_hbm [thread:$0]  %s1369, 4096, %s1367, %s1344, 256, 256, 16
        $region36: #{tpu_custom_call.1} parent=31 // pred_fallthru
          _
        // Predicated region
        $region37: #{tpu_custom_call.1} parent=31 // pred_check
          %p1375 = pneg %p132
        $region38: #{tpu_custom_call.1} parent=31 // pred_check_branch
          %1377 = sbr.rel (%p1375) target = $region40
        $region39: #{tpu_custom_call.1} parent=31 // pred_region
          %s1378 = smul.u32 16, %s20
        $region40: #{tpu_custom_call.1} parent=31 // pred_fallthru
          _
        // Predicated region
        $region41: #{tpu_custom_call.1} parent=31 // pred_check
          %p1379 = pneg %p158
        $region42: #{tpu_custom_call.1} parent=31 // pred_check_branch
          %1381 = sbr.rel (%p1379) target = $region44
        $region43: #{tpu_custom_call.1} parent=31 // pred_region
          %s1382 = smul.u32 16, %s20
        $region44: #{tpu_custom_call.1} parent=31 // pred_fallthru
          _
      $region32: #{tpu_custom_call.1} parent=5 // pred_fallthru
        _
      %p1383 = scmp.le.s32.totalorder 2, %s15
      // Predicated region
      $region45: #{tpu_custom_call.1} parent=5 // pred_check
        %p1384 = pneg %p1383
      $region46: #{tpu_custom_call.1} parent=5 // pred_check_branch
        %1386 = sbr.rel (%p1384) target = $region48
      $region47: #{tpu_custom_call.1} parent=5 // pred_region
        %s1387 = ssub.s32 %s15, 2
        // Predicated region
        $region49: #{tpu_custom_call.1} parent=47 // pred_check
          %p1388 = pneg %p112
        $region50: #{tpu_custom_call.1} parent=47 // pred_check_branch
          %1390 = sbr.rel (%p1388) target = $region52
        $region51: #{tpu_custom_call.1} parent=47 // pred_region
          %s1391 = sand.u32 %s97, 1
          %s1392 = scalar_lea.sflag [#allocation3], %s1391
          %s1393 = sand.u32 %s97, 1
          %s1394 = smul.addr %s1393, 256
          %s1395 = scalar_lea.vmem [#allocation2], %s1394
          %1396 = dma.done %s1392, 4096
        $region52: #{tpu_custom_call.1} parent=47 // pred_fallthru
          _
        // Predicated region
        $region53: #{tpu_custom_call.1} parent=47 // pred_check
          %p1397 = pneg %p138
        $region54: #{tpu_custom_call.1} parent=47 // pred_check_branch
          %1399 = sbr.rel (%p1397) target = $region56
        $region55: #{tpu_custom_call.1} parent=47 // pred_region
          %s1400 = smul.u32 16, %s21
          %p1401 = scmp.lt.s32.totalorder %s1400, 31
          %s1402 = scalar_select %p1401, %s1400, 31
          %s1403 = smul.addr %s1402, 8
          %s1404 = scalar_lea.vmem %s4, %s1403
        $region56: #{tpu_custom_call.1} parent=47 // pred_fallthru
          _
        // Predicated region
        $region57: #{tpu_custom_call.1} parent=47 // pred_check
          %p1405 = pneg %p164
        $region58: #{tpu_custom_call.1} parent=47 // pred_check_branch
          %1407 = sbr.rel (%p1405) target = $region60
        $region59: #{tpu_custom_call.1} parent=47 // pred_region
          %s1408 = smul.u32 16, %s21
          %p1409 = scmp.lt.s32.totalorder %s1408, 31
          %s1410 = scalar_select %p1409, %s1408, 31
          %s1411 = smul.addr %s1410, 8
          %s1412 = scalar_lea.vmem %s5, %s1411
        $region60: #{tpu_custom_call.1} parent=47 // pred_fallthru
          _
      $region48: #{tpu_custom_call.1} parent=5 // pred_fallthru
        _
    $region6: #{tpu_custom_call.1} parent=1 // loop_footer
      %s19 = sadd.s32 1, %s15
    $region7: #{tpu_custom_call.1} parent=1 // loop_footer_branch
      %14 = sbr.rel target = $region3
    $region8: #{tpu_custom_call.1} parent=1 // loop_exit
      _
    %1413 = vsyncpa [#allocation3], 1
    %s1414 = scalar_lea.sflag [#allocation3], 1
    %1415 = vsyncpa %s1414, 1

</llo_original>
